<compile_context>
chip_gen: v5e
topology: v5e:2x2
jax: 0.10.0
libtpu: 0.0.40
codegen_flags: <defaults>
</compile_context>

<pallas_src>
import math

import jax
import jax.numpy as jnp
from jax.experimental import pallas as pl
from jax.experimental.pallas import tpu as pltpu

# Problem sizes (small, tile-friendly: N and D_RFF multiples of (8,128) tiling).
N = 128        # number of samples
D_S = 8        # sensitive-attribute dimension
D_RFF = 128    # kernel_s_opts['rff_dim']

# Module hyper-parameters (from __init__).
NORM_S = 1.0   # self.norm_s
GAMMA = 1e-6   # self.eps
SIGMA = 1.0    # Gaussian kernel bandwidth (part of kernel_s_opts)


# ----------------------------------------------------------------------------
# Pallas kernels
# ----------------------------------------------------------------------------
def rff_hyb_kernel(sa_ref, wa_ref, fz_ref, out_ref):
    """RFF branch (self.rff == True).

    sa = [s, 1]  (N, D_S+1),  wa = [W ; b]  (D_S+1, D_RFF)  -> bias folded into
    the MXU matmul.  phi = cos(sa @ wa) unscaled; the sqrt(2/D)^2 = 2/D factor
    is applied to the final scalar.  phi mean-centering omitted (f_z centered).
    """
    sa = sa_ref[...]                                   # (N, D_S+1) f32
    wa = wa_ref[...]                                   # (D_S+1, D_RFF) f32
    n = sa.shape[0]
    d_rff = wa.shape[1]

    proj = jnp.dot(sa, wa, preferred_element_type=jnp.float32)   # (N, D_RFF)
    phi = jnp.cos(proj)                                # unscaled cos -> EUP only

    fz = fz_ref[...]                                   # (1, N) lane-major row
    fz = fz - jnp.mean(fz)                             # f_z -= f_z.mean()

    # f_z^T @ phi_s as an M=1, K=N matmul on the MXU -> (1, D_RFF)
    hyb_vec = jnp.dot(fz, phi, preferred_element_type=jnp.float32)
    # (hyb @ hyb^T) / n^2 with the 2/D RFF scale folded into the scalar.
    hyb = jnp.sum(hyb_vec * hyb_vec) * jnp.float32(2.0 / (d_rff * n * n))

    fz_var = jnp.sum(fz * fz) / jnp.float32(n - 1)     # torch.var (unbiased)
    out_ref[0, 0] = -jnp.abs(hyb / (fz_var * NORM_S + GAMMA))


def gaussian_hyb_kernel(a_ref, b_ref, fz_ref, out_ref):
    """Non-RFF branch (self.rff == False).

    A = [s, ||s||^2, 1], B = (-0.5/sigma^2) * [-2 s^T ; 1 ; ||s||^2]:
    A @ B gives -d2/(2 sigma^2) directly (one MXU matmul, native orientation).
    Double mean-centering + transpose of the torch code omitted (K symmetric,
    f_z mean-centered -> exact no-op).  hyb = f_z^T K f_z / n^2.
    """
    a = a_ref[...]                                     # (N, D_S+2) f32
    b = b_ref[...]                                     # (D_S+2, N) f32
    n = a.shape[0]

    # Scaled negative squared distances; clamp at 0 to kill fp cancellation
    # (exponent must be <= 0, matching the exact-pairwise reference).
    expo = jnp.minimum(
        jnp.dot(a, b, preferred_element_type=jnp.float32), 0.0)      # (N, N)
    k = jnp.exp(expo)                                   # Gaussian Gram (N, N)

    fz = fz_ref[...]                                   # (1, N) lane-major row
    fz = fz - jnp.mean(fz)                             # f_z -= f_z.mean()

    fz_k = jnp.dot(fz, k, preferred_element_type=jnp.float32)        # (1, N)
    hyb = jnp.sum(fz_k * fz) / jnp.float32(n * n)      # f_z^T K f_z / n^2

    fz_var = jnp.sum(fz * fz) / jnp.float32(n - 1)     # torch.var (unbiased)
    out_ref[0, 0] = -jnp.abs(hyb / (fz_var * NORM_S + GAMMA))


# ----------------------------------------------------------------------------
# Wrappers (single grid point; all operands fit VMEM easily at these sizes)
# ----------------------------------------------------------------------------
def hyb_adversary_loss_rff(f_z, s, w, b):
    n, d_s = s.shape
    d_rff = w.shape[1]
    fz_row = f_z.reshape(1, n).astype(jnp.float32)              # lane-major f_z
    # Fold the RFF bias into the matmul: s -> [s, 1], W -> [W ; b].
    s_aug = jnp.concatenate([s, jnp.ones((n, 1), jnp.float32)], axis=1)
    w_aug = jnp.concatenate([w, b.reshape(1, d_rff)], axis=0)
    cost = pl.CostEstimate(
        flops=2 * n * (d_s + 1) * d_rff + 2 * n * d_rff + 4 * n * d_rff + 8 * n,
        transcendentals=n * d_rff,
        bytes_accessed=4 * (s_aug.size + w_aug.size + fz_row.size + 1),
    )
    out = pl.pallas_call(
        rff_hyb_kernel,
        out_shape=jax.ShapeDtypeStruct((1, 1), jnp.float32),
        in_specs=[pl.BlockSpec(memory_space=pltpu.MemorySpace.VMEM)] * 3,
        out_specs=pl.BlockSpec(memory_space=pltpu.MemorySpace.SMEM),
        cost_estimate=cost,
    )(s_aug, w_aug, fz_row)
    return out[0, 0]


def hyb_adversary_loss_gaussian(f_z, s, sigma=SIGMA):
    n, d_s = s.shape
    fz_row = f_z.reshape(1, n).astype(jnp.float32)              # lane-major f_z
    # Augmented-matrix trick: d2 (and the -1/(2 sigma^2) scale) become one matmul.
    sq = jnp.sum(s * s, axis=1, keepdims=True)                  # (N, 1) ||s_i||^2
    a = jnp.concatenate([s, sq, jnp.ones((n, 1), jnp.float32)], axis=1)  # (N, D_S+2)
    scale = jnp.float32(-0.5 / (sigma * sigma))
    b = scale * jnp.concatenate(
        [-2.0 * s.T, jnp.ones((1, n), jnp.float32), sq.T], axis=0)       # (D_S+2, N)
    cost = pl.CostEstimate(
        flops=2 * n * n * (d_s + 2) + 2 * n * n + 2 * n * n + 8 * n,
        transcendentals=n * n,
        bytes_accessed=4 * (a.size + b.size + fz_row.size + 1),
    )
    out = pl.pallas_call(
        gaussian_hyb_kernel,
        out_shape=jax.ShapeDtypeStruct((1, 1), jnp.float32),
        in_specs=[pl.BlockSpec(memory_space=pltpu.MemorySpace.VMEM)] * 3,
        out_specs=pl.BlockSpec(memory_space=pltpu.MemorySpace.SMEM),
        cost_estimate=cost,
    )(a, b, fz_row)
    return out[0, 0]


# ----------------------------------------------------------------------------
# Pure-JAX references (mirror the torch forward 1:1, including the centerings)
# ----------------------------------------------------------------------------
def ref_rff(f_z, s, w, b):
    phi = math.sqrt(2.0 / w.shape[1]) * jnp.cos(s @ w + b)
    phi = phi - phi.mean(axis=0, keepdims=True)
    fz = f_z - f_z.mean()
    hyb_vec = fz.T @ phi
    n = phi.shape[0]
    hyb = (hyb_vec @ hyb_vec.T)[0, 0] / n**2
    fz_var = jnp.var(fz, ddof=1)
    return -jnp.abs(hyb / (fz_var * NORM_S + GAMMA))


def ref_gaussian(f_z, s):
    d2 = jnp.sum((s[:, None, :] - s[None, :, :]) ** 2, axis=-1)
    k = jnp.exp(-d2 / (2.0 * SIGMA * SIGMA))
    k = k - k.mean(axis=0, keepdims=True)
    kt = k.T
    phi = kt - kt.mean(axis=0, keepdims=True)
    fz = f_z - f_z.mean()
    n = phi.shape[0]
    hyb = (fz.T @ phi @ fz)[0, 0] / n**2
    fz_var = jnp.var(fz, ddof=1)
    return -jnp.abs(hyb / (fz_var * NORM_S + GAMMA))


if __name__ == "__main__":
    key = jax.random.PRNGKey(0)
    k_fz, k_s, k_w, k_b = jax.random.split(key, 4)

    f_z = jax.random.normal(k_fz, (N, 1), dtype=jnp.float32)
    s = jax.random.normal(k_s, (N, D_S), dtype=jnp.float32)
    # Deterministic RFF parameters for the Gaussian kernel with bandwidth SIGMA.
    w = jax.random.normal(k_w, (D_S, D_RFF), dtype=jnp.float32) / SIGMA
    b = jax.random.uniform(k_b, (1, D_RFF), dtype=jnp.float32,
                           minval=0.0, maxval=2.0 * math.pi)

    # RFF branch
    loss_rff = jax.block_until_ready(hyb_adversary_loss_rff(f_z, s, w, b))
    ref_loss_rff = ref_rff(f_z, s, w, b)
    assert jnp.allclose(loss_rff, ref_loss_rff, rtol=1e-4, atol=1e-6), (
        loss_rff, ref_loss_rff)

    # Non-RFF (explicit Gaussian Gram matrix) branch
    loss_g = jax.block_until_ready(hyb_adversary_loss_gaussian(f_z, s))
    ref_loss_g = ref_gaussian(f_z, s)
    assert jnp.allclose(loss_g, ref_loss_g, rtol=1e-4, atol=1e-6), (
        loss_g, ref_loss_g)

    print("KERNEL_OK")
</pallas_src>

<mosaic_0001>
module attributes {stable_mosaic.version = 11 : i64} {
  func.func @rff_hyb_kernel(%arg0: memref<128x9xf32, #tpu.memory_space<vmem>>, %arg1: memref<9x128xf32, #tpu.memory_space<vmem>>, %arg2: memref<1x128xf32, #tpu.memory_space<vmem>>, %arg3: memref<1x1xf32, #tpu.memory_space<smem>>) attributes {dimension_semantics = [], scalar_prefetch = 0 : i64, scratch_operands = 0 : i64, tpu.core_type = #tpu.core_type<tc>} {
    %c0 = arith.constant 0 : index
    %c0_0 = arith.constant 0 : index
    %0 = vector.load %arg0[%c0, %c0_0] : memref<128x9xf32, #tpu.memory_space<vmem>>, vector<128x9xf32>
    %c0_1 = arith.constant 0 : index
    %c0_2 = arith.constant 0 : index
    %1 = vector.load %arg1[%c0_1, %c0_2] : memref<9x128xf32, #tpu.memory_space<vmem>>, vector<9x128xf32>
    %cst = arith.constant dense<0.000000e+00> : vector<128x128xf32>
    %2 = tpu.matmul %0, %1, %cst {dimension_numbers = #tpu.dot_dimension_numbers<[1], [0], [0], [1], [0, 0, 1, 1], [], []>} : vector<128x9xf32>, vector<9x128xf32>, vector<128x128xf32> -> vector<128x128xf32>
    %3 = math.cos %2 : vector<128x128xf32>
    %c0_3 = arith.constant 0 : index
    %c0_4 = arith.constant 0 : index
    %4 = vector.load %arg2[%c0_3, %c0_4] : memref<1x128xf32, #tpu.memory_space<vmem>>, vector<1x128xf32>
    %5 = vector.shape_cast %4 : vector<1x128xf32> to vector<1x1x128xf32>
    %cst_5 = arith.constant dense<0.000000e+00> : vector<1xf32>
    %6 = vector.multi_reduction <add>, %5, %cst_5 [1, 2] : vector<1x1x128xf32> to vector<1xf32>
    %7 = vector.shape_cast %6 : vector<1xf32> to vector<1x1x1xf32>
    %8 = vector.extract %7[0, 0, 0] : f32 from vector<1x1x1xf32>
    %cst_6 = arith.constant 1.280000e+02 : f32
    %9 = arith.divf %8, %cst_6 : f32
    %10 = vector.broadcast %9 : f32 to vector<1x128xf32>
    %11 = arith.subf %4, %10 : vector<1x128xf32>
    %cst_7 = arith.constant dense<0.000000e+00> : vector<1x128xf32>
    %12 = tpu.matmul %11, %3, %cst_7 {dimension_numbers = #tpu.dot_dimension_numbers<[1], [0], [0], [1], [0, 0, 1, 1], [], []>} : vector<1x128xf32>, vector<128x128xf32>, vector<1x128xf32> -> vector<1x128xf32>
    %13 = arith.mulf %12, %12 : vector<1x128xf32>
    %14 = vector.shape_cast %13 : vector<1x128xf32> to vector<1x1x128xf32>
    %cst_8 = arith.constant dense<0.000000e+00> : vector<1xf32>
    %15 = vector.multi_reduction <add>, %14, %cst_8 [1, 2] : vector<1x1x128xf32> to vector<1xf32>
    %16 = vector.shape_cast %15 : vector<1xf32> to vector<1x1x1xf32>
    %17 = vector.extract %16[0, 0, 0] : f32 from vector<1x1x1xf32>
    %cst_9 = arith.constant 9.53674316E-7 : f32
    %18 = arith.mulf %17, %cst_9 : f32
    %19 = arith.mulf %11, %11 : vector<1x128xf32>
    %20 = vector.shape_cast %19 : vector<1x128xf32> to vector<1x1x128xf32>
    %cst_10 = arith.constant dense<0.000000e+00> : vector<1xf32>
    %21 = vector.multi_reduction <add>, %20, %cst_10 [1, 2] : vector<1x1x128xf32> to vector<1xf32>
    %22 = vector.shape_cast %21 : vector<1xf32> to vector<1x1x1xf32>
    %23 = vector.extract %22[0, 0, 0] : f32 from vector<1x1x1xf32>
    %cst_11 = arith.constant 1.270000e+02 : f32
    %24 = arith.divf %23, %cst_11 : f32
    %cst_12 = arith.constant 1.000000e+00 : f32
    %25 = arith.mulf %24, %cst_12 : f32
    %cst_13 = arith.constant 9.99999997E-7 : f32
    %26 = arith.addf %25, %cst_13 : f32
    %27 = arith.divf %18, %26 : f32
    %28 = math.absf %27 : f32
    %cst_14 = arith.constant 0.000000e+00 : f32
    %29 = arith.subf %cst_14, %28 : f32
    %c0_15 = arith.constant 0 : index
    %c0_16 = arith.constant 0 : index
    %30 = memref.load %arg3[%c0_15, %c0_16] : memref<1x1xf32, #tpu.memory_space<smem>>
    memref.store %29, %arg3[%c0_15, %c0_16] : memref<1x1xf32, #tpu.memory_space<smem>>
    return
  }
}

</mosaic_0001>

<llo_original>
// kernel: tpu_custom_call.1
$region0: #{tpu_custom_call.1}
  #allocation0 [shape = 'u32[]', space=smem, size = 0x4, offset = 0x4, fixed_abs, tag = 'smem constant byte address 0x4 - core index']
  #allocation1 [shape = 'u32[72,128]{1,0:T(1,128)}', space=vmem, size = 0x9000, scoped, tag = 'internal scratch']
  %s0 = inlined_call_operand.vmem [shape: f32[128,9], index: 0, kind: input, shape index: {}]
  %s1 = inlined_call_operand.vmem [shape: f32[9,128], index: 1, kind: input, shape index: {}]
  %s2 = inlined_call_operand.vmem [shape: f32[1,128], index: 2, kind: input, shape index: {}]
  %s3 = inlined_call_operand.hbm [shape: f32[1,1], index: 3, kind: output, shape index: {}]
  %s4 = sld [smem:[#allocation0]]
  $region22: #{tpu_custom_call.1} parent=0
    _
  %s6 = ssub.s32 1, %s4
  %s7 = scalar_select 0, %s6, %s4
  $region1: #{tpu_custom_call.1} parent=0
    #allocation2 [shape = 'u8[512]{0}', space=smem, size = 0x200, scoped, tag = 'output window, operand 0, single buffered']
    #allocation3 [shape = 's32[1]{0}', space=sflag, size = 0x4, scoped, tag = 'scoped memory for tpu_custom_call.1']
    %8 = vsyncpa [#allocation3], 0
    // Predicated region
    $region2: #{tpu_custom_call.1} parent=1 // pred_check
      _
    $region3: #{tpu_custom_call.1} parent=1 // pred_check_branch
      %10 = sbr.rel (0) target = $region5
    $region4: #{tpu_custom_call.1} parent=1 // pred_region
      _
    $region5: #{tpu_custom_call.1} parent=1 // pred_fallthru
      _
    // Predicated region
    $region6: #{tpu_custom_call.1} parent=1 // pred_check
      _
    $region7: #{tpu_custom_call.1} parent=1 // pred_check_branch
      %12 = sbr.rel (0) target = $region9
    $region8: #{tpu_custom_call.1} parent=1 // pred_region
      _
    $region9: #{tpu_custom_call.1} parent=1 // pred_fallthru
      _
    // Predicated region
    $region10: #{tpu_custom_call.1} parent=1 // pred_check
      _
    $region11: #{tpu_custom_call.1} parent=1 // pred_check_branch
      %14 = sbr.rel (0) target = $region13
    $region12: #{tpu_custom_call.1} parent=1 // pred_region
      _
    $region13: #{tpu_custom_call.1} parent=1 // pred_fallthru
      _
    %v15 = vld [vmem:[%s0] sm:$0xff]
    %v16 = vld [vmem:[%s0 + $0x8] sm:$0xff]
    %v17 = vld [vmem:[%s0 + $0x10] sm:$0xff]
    %v18 = vld [vmem:[%s0 + $0x18] sm:$0xff]
    %v19 = vld [vmem:[%s0 + $0x20] sm:$0xff]
    %v20 = vld [vmem:[%s0 + $0x28] sm:$0xff]
    %v21 = vld [vmem:[%s0 + $0x30] sm:$0xff]
    %v22 = vld [vmem:[%s0 + $0x38] sm:$0xff]
    %v23 = vld [vmem:[%s0 + $0x40] sm:$0xff]
    %v24 = vld [vmem:[%s0 + $0x48] sm:$0xff]
    %v25 = vld [vmem:[%s0 + $0x50] sm:$0xff]
    %v26 = vld [vmem:[%s0 + $0x58] sm:$0xff]
    %v27 = vld [vmem:[%s0 + $0x60] sm:$0xff]
    %v28 = vld [vmem:[%s0 + $0x68] sm:$0xff]
    %v29 = vld [vmem:[%s0 + $0x70] sm:$0xff]
    %v30 = vld [vmem:[%s0 + $0x78] sm:$0xff]
    %v31 = vld [vmem:[%s1] sm:$0xff]
    %v32 = vld [vmem:[%s1 + $0x8] sm:$0x1]
    %vm33 = vcmask 72704
    %v35 = vsel %vm33, %v15, 0
    %v38 = vsel %vm33, %v16, 0
    %v41 = vsel %vm33, %v17, 0
    %v44 = vsel %vm33, %v18, 0
    %v47 = vsel %vm33, %v19, 0
    %v50 = vsel %vm33, %v20, 0
    %v53 = vsel %vm33, %v21, 0
    %v56 = vsel %vm33, %v22, 0
    %v59 = vsel %vm33, %v23, 0
    %v62 = vsel %vm33, %v24, 0
    %v65 = vsel %vm33, %v25, 0
    %v68 = vsel %vm33, %v26, 0
    %v71 = vsel %vm33, %v27, 0
    %v74 = vsel %vm33, %v28, 0
    %v77 = vsel %vm33, %v29, 0
    %v80 = vsel %vm33, %v30, 0
    %vm82 = vcmask 1040384
    %v84 = vsel %vm82, %v32, 0
    %86 = vmatpush.msra.mxu0 0.0
    %87 = vmatpush.msra.mxu0 0.0
    %88 = vmatpush.msra.mxu0 0.0
    %89 = vmatpush.msra.mxu0 0.0
    %90 = vmatpush.msra.mxu0 0.0
    %91 = vmatpush.msra.mxu0 0.0
    %92 = vmatpush.msra.mxu0 0.0
    %93 = vmatpush.msra.mxu0 0.0
    %94 = vmatpush.msra.mxu0 0.0
    %95 = vmatpush.msra.mxu0 0.0
    %96 = vmatpush.msra.mxu0 0.0
    %97 = vmatpush.msra.mxu0 0.0
    %98 = vmatpush.msra.mxu0 0.0
    %99 = vmatpush.msra.mxu0 0.0
    %100 = vmatpush.msra.mxu0 %v84
    %101 = vmatpush.msra.mxu0 %v31
    %102 = vmatmul.f32.gmra.mxu0 %v35
    %v103 = vpop.f32.mrf.mxu0
    %v104 = vadd.f32 0.0, %v103
    %105 = vmatmul.f32.gmra.mxu0 %v38
    %v106 = vpop.f32.mrf.mxu0
    %v107 = vadd.f32 0.0, %v106
    %108 = vmatmul.f32.gmra.mxu0 %v41
    %v109 = vpop.f32.mrf.mxu0
    %v110 = vadd.f32 0.0, %v109
    %111 = vmatmul.f32.gmra.mxu0 %v44
    %v112 = vpop.f32.mrf.mxu0
    %v113 = vadd.f32 0.0, %v112
    %114 = vmatmul.f32.gmra.mxu0 %v47
    %v115 = vpop.f32.mrf.mxu0
    %v116 = vadd.f32 0.0, %v115
    %117 = vmatmul.f32.gmra.mxu0 %v50
    %v118 = vpop.f32.mrf.mxu0
    %v119 = vadd.f32 0.0, %v118
    %120 = vmatmul.f32.gmra.mxu0 %v53
    %v121 = vpop.f32.mrf.mxu0
    %v122 = vadd.f32 0.0, %v121
    %123 = vmatmul.f32.gmra.mxu0 %v56
    %v124 = vpop.f32.mrf.mxu0
    %v125 = vadd.f32 0.0, %v124
    %126 = vmatmul.f32.gmra.mxu0 %v59
    %v127 = vpop.f32.mrf.mxu0
    %v128 = vadd.f32 0.0, %v127
    %129 = vmatmul.f32.gmra.mxu0 %v62
    %v130 = vpop.f32.mrf.mxu0
    %v131 = vadd.f32 0.0, %v130
    %132 = vmatmul.f32.gmra.mxu0 %v65
    %v133 = vpop.f32.mrf.mxu0
    %v134 = vadd.f32 0.0, %v133
    %135 = vmatmul.f32.gmra.mxu0 %v68
    %v136 = vpop.f32.mrf.mxu0
    %v137 = vadd.f32 0.0, %v136
    %138 = vmatmul.f32.gmra.mxu0 %v71
    %v139 = vpop.f32.mrf.mxu0
    %v140 = vadd.f32 0.0, %v139
    %141 = vmatmul.f32.gmra.mxu0 %v74
    %v142 = vpop.f32.mrf.mxu0
    %v143 = vadd.f32 0.0, %v142
    %144 = vmatmul.f32.gmra.mxu0 %v77
    %v145 = vpop.f32.mrf.mxu0
    %v146 = vadd.f32 0.0, %v145
    %147 = vmatmul.f32.gmra.mxu0 %v80
    %v148 = vpop.f32.mrf.mxu0
    %v149 = vadd.f32 0.0, %v148
    %150 = vdwg.mxu0
    %v151 = vand.u32 2147483647, %v104
    %vm152 = vcmp.le.f32.partialorder %v151, 0.7853982
    %vm153 = vcmp.lt.s32.totalorder %v104, 0
    %v154 = vand.u32 %v104, 2139095040
    %v155 = vshrl.u32 %v154, 23
    %v156 = vsub.s32 %v155, 127
    %v157 = vand.u32 2147483647, %v104
    %v158 = vand.u32 %v157, 8388607
    %v159 = vor.u32 %v158, 8388608
    %v160 = vsub.s32 0, %v159
    %v161 = vadd.s32 %v156, 1
    %vm162 = vcmp.gt.s32.totalorder %v161, 0
    %v163 = vsel %vm162, %v161, 0
    %v164 = vshrl.u32 %v163, 5
    %v165 = vand.u32 %v163, 31
    %v166 = vsub.s32 32, %v165
    %v167 = vshrl.u32 683565275, %v166
    %v168 = vshll.u32 683565275, %v165
    %v169 = vshrl.u32 2475754826, %v166
    %v170 = vor.u32 %v168, %v169
    %v171 = vshll.u32 2475754826, %v165
    %v172 = vshrl.u32 2131351028, %v166
    %v173 = vor.u32 %v171, %v172
    %v174 = vshll.u32 2131351028, %v165
    %v175 = vshrl.u32 2102212464, %v166
    %v176 = vor.u32 %v174, %v175
    %v177 = vshll.u32 2102212464, %v165
    %v178 = vshrl.u32 920167782, %v166
    %v179 = vor.u32 %v177, %v178
    %v180 = vshll.u32 920167782, %v165
    %v181 = vshrl.u32 1326507024, %v166
    %v182 = vor.u32 %v180, %v181
    %vm183 = vcmp.lt.s32.totalorder %v164, 1
    %vm184 = vcmp.lt.s32.totalorder %v164, 2
    %vm185 = vcmp.lt.s32.totalorder %v164, 3
    %vm186 = vcmp.lt.s32.totalorder %v164, 4
    %v187 = vsel %vm183, %v167, %v170
    %v188 = vsel %vm186, %v176, 2102212464
    %v189 = vsel %vm185, %v173, %v188
    %v190 = vsel %vm184, %v187, %v189
    %v191 = vsel %vm183, %v170, %v173
    %v192 = vsel %vm186, %v179, 920167782
    %v193 = vsel %vm185, %v176, %v192
    %v194 = vsel %vm184, %v191, %v193
    %v195 = vsel %vm183, %v173, %v176
    %v196 = vsel %vm186, %v182, 1326507024
    %v197 = vsel %vm185, %v179, %v196
    %v198 = vsel %vm184, %v195, %v197
    %v199 = vshll.u32 %v159, 8
    %v200 = vand.u32 %v199, 65535
    %v201 = vshrl.u32 %v199, 16
    %v202 = vand.u32 %v198, 65535
    %v203 = vshrl.u32 %v198, 16
    %v204 = vmul.u32 %v200, %v202
    %v205 = vmul.u32 %v200, %v203
    %v206 = vmul.u32 %v201, %v202
    %v207 = vmul.u32 %v201, %v203
    %v208 = vshll.u32 %v205, 16
    %v209 = vshrl.u32 %v205, 16
    %v210 = vshll.u32 %v206, 16
    %v211 = vshrl.u32 %v206, 16
    %vm212 = vc.u32 %v204, %v208
    %v213 = vsel %vm212, 1, 0
    %v214 = vadd.s32 %v204, %v208
    %v215 = vadd.s32 %v207, %v213
    %vm216 = vc.u32 %v214, %v210
    %v217 = vsel %vm216, 1, 0
    %v218 = vadd.s32 %v214, %v210
    %v219 = vadd.s32 %v215, %v217
    %v220 = vadd.s32 %v219, %v209
    %v221 = vadd.s32 %v220, %v211
    %v222 = vand.u32 %v199, 65535
    %v223 = vshrl.u32 %v199, 16
    %v224 = vand.u32 %v194, 65535
    %v225 = vshrl.u32 %v194, 16
    %v226 = vmul.u32 %v222, %v224
    %v227 = vmul.u32 %v222, %v225
    %v228 = vmul.u32 %v223, %v224
    %v229 = vmul.u32 %v223, %v225
    %v230 = vshll.u32 %v227, 16
    %v231 = vshrl.u32 %v227, 16
    %v232 = vshll.u32 %v228, 16
    %v233 = vshrl.u32 %v228, 16
    %vm234 = vc.u32 %v226, %v230
    %v235 = vsel %vm234, 1, 0
    %v236 = vadd.s32 %v226, %v230
    %v237 = vadd.s32 %v229, %v235
    %vm238 = vc.u32 %v236, %v232
    %v239 = vsel %vm238, 1, 0
    %v240 = vadd.s32 %v236, %v232
    %v241 = vadd.s32 %v237, %v239
    %v242 = vadd.s32 %v241, %v231
    %v243 = vadd.s32 %v242, %v233
    %v244 = vmul.u32 %v199, %v190
    %v245 = vadd.s32 %v221, %v240
    %vm246 = vc.u32 %v221, %v240
    %v247 = vadd.s32 %v243, 1
    %v248 = vsel %vm246, %v247, %v243
    %v249 = vadd.s32 %v244, %v248
    %v250 = vadd.s32 %v249, 536870912
    %v251 = vshrl.u32 %v250, 30
    %v252 = vshll.u32 %v251, 30
    %v253 = vsub.s32 %v249, %v252
    %vm254 = vcmp.lt.s32.totalorder %v253, 0
    %v255 = vsub.s32 0, %v253
    %v256 = vsel %vm254, %v255, %v253
    %v257 = vclz %v256
    %v258 = vsub.s32 %v257, 2
    %vm259 = vcmp.gt.s32.totalorder 0, %v258
    %v260 = vsel %vm259, 0, %v258
    %v261 = vsub.s32 32, %v260
    %v262 = vshll.u32 %v253, %v260
    %v263 = vshrl.u32 %v245, %v261
    %v264 = vor.u32 %v262, %v263
    %v265 = vsub.s32 4294967266, %v260
    %v266 = vadd.s32 %v265, 127
    %v267 = vshll.u32 %v266, 23
    %v268 = vor.u32 4788187, %v267
    %v269 = vand.u32 2147483647, %v268
    %v271 = vcvt.s32.f32 %v264
    %v272 = vmul.f32 %v271, %v269
    %v273 = vxor.u32 %v272, 2147483648
    %v274 = vsel %vm153, %v273, %v272
    %v275 = vsub.s32 4, %v251
    %v276 = vsel %vm153, %v275, %v251
    %v277 = vsel %vm152, %v104, %v274
    %v278 = vsel %vm152, 0, %v276
    %v279 = vmul.f32 %v277, %v277
    %v280 = vmul.f32 %v279, -0.001358992
    %v281 = vadd.f32 %v280, 0.041655596
    %v282 = vmul.f32 %v279, %v281
    %v283 = vadd.f32 %v282, -0.4999988
    %v284 = vmul.f32 %v279, %v283
    %v285 = vadd.f32 1.0, %v284
    %v286 = vmul.f32 %v277, %v277
    %v287 = vmul.f32 %v286, -0.00019511016
    %v288 = vadd.f32 %v287, 0.008332121
    %v289 = vmul.f32 %v286, %v288
    %v290 = vadd.f32 %v289, -0.16666654
    %v291 = vmul.f32 %v286, %v290
    %v292 = vadd.f32 %v291, 1.0
    %v293 = vmul.f32 %v292, %v277
    %vm294 = vweird.f32 %v104
    %v295 = vand.u32 %v278, 3
    %vm296 = vcmp.lt.s32.totalorder %v295, 2
    %vm297 = vcmp.eq.s32.totalorder %v295, 0
    %v298 = vxor.u32 %v293, 2147483648
    %v299 = vsel %vm297, %v285, %v298
    %vm300 = vcmp.eq.s32.totalorder %v295, 2
    %v301 = vxor.u32 %v285, 2147483648
    %v302 = vsel %vm300, %v301, %v293
    %v303 = vsel %vm296, %v299, %v302
    %v304 = vsel %vm294, nan, %v303
    %v305 = vand.u32 2147483647, %v107
    %vm306 = vcmp.le.f32.partialorder %v305, 0.7853982
    %vm307 = vcmp.lt.s32.totalorder %v107, 0
    %v308 = vand.u32 %v107, 2139095040
    %v309 = vshrl.u32 %v308, 23
    %v310 = vsub.s32 %v309, 127
    %v311 = vand.u32 2147483647, %v107
    %v312 = vand.u32 %v311, 8388607
    %v313 = vor.u32 %v312, 8388608
    %v314 = vsub.s32 0, %v313
    %v315 = vadd.s32 %v310, 1
    %vm316 = vcmp.gt.s32.totalorder %v315, 0
    %v317 = vsel %vm316, %v315, 0
    %v318 = vshrl.u32 %v317, 5
    %v319 = vand.u32 %v317, 31
    %v320 = vsub.s32 32, %v319
    %v321 = vshrl.u32 683565275, %v320
    %v322 = vshll.u32 683565275, %v319
    %v323 = vshrl.u32 2475754826, %v320
    %v324 = vor.u32 %v322, %v323
    %v325 = vshll.u32 2475754826, %v319
    %v326 = vshrl.u32 2131351028, %v320
    %v327 = vor.u32 %v325, %v326
    %v328 = vshll.u32 2131351028, %v319
    %v329 = vshrl.u32 2102212464, %v320
    %v330 = vor.u32 %v328, %v329
    %v331 = vshll.u32 2102212464, %v319
    %v332 = vshrl.u32 920167782, %v320
    %v333 = vor.u32 %v331, %v332
    %v334 = vshll.u32 920167782, %v319
    %v335 = vshrl.u32 1326507024, %v320
    %v336 = vor.u32 %v334, %v335
    %vm337 = vcmp.lt.s32.totalorder %v318, 1
    %vm338 = vcmp.lt.s32.totalorder %v318, 2
    %vm339 = vcmp.lt.s32.totalorder %v318, 3
    %vm340 = vcmp.lt.s32.totalorder %v318, 4
    %v341 = vsel %vm337, %v321, %v324
    %v342 = vsel %vm340, %v330, 2102212464
    %v343 = vsel %vm339, %v327, %v342
    %v344 = vsel %vm338, %v341, %v343
    %v345 = vsel %vm337, %v324, %v327
    %v346 = vsel %vm340, %v333, 920167782
    %v347 = vsel %vm339, %v330, %v346
    %v348 = vsel %vm338, %v345, %v347
    %v349 = vsel %vm337, %v327, %v330
    %v350 = vsel %vm340, %v336, 1326507024
    %v351 = vsel %vm339, %v333, %v350
    %v352 = vsel %vm338, %v349, %v351
    %v353 = vshll.u32 %v313, 8
    %v354 = vand.u32 %v353, 65535
    %v355 = vshrl.u32 %v353, 16
    %v356 = vand.u32 %v352, 65535
    %v357 = vshrl.u32 %v352, 16
    %v358 = vmul.u32 %v354, %v356
    %v359 = vmul.u32 %v354, %v357
    %v360 = vmul.u32 %v355, %v356
    %v361 = vmul.u32 %v355, %v357
    %v362 = vshll.u32 %v359, 16
    %v363 = vshrl.u32 %v359, 16
    %v364 = vshll.u32 %v360, 16
    %v365 = vshrl.u32 %v360, 16
    %vm366 = vc.u32 %v358, %v362
    %v367 = vsel %vm366, 1, 0
    %v368 = vadd.s32 %v358, %v362
    %v369 = vadd.s32 %v361, %v367
    %vm370 = vc.u32 %v368, %v364
    %v371 = vsel %vm370, 1, 0
    %v372 = vadd.s32 %v368, %v364
    %v373 = vadd.s32 %v369, %v371
    %v374 = vadd.s32 %v373, %v363
    %v375 = vadd.s32 %v374, %v365
    %v376 = vand.u32 %v353, 65535
    %v377 = vshrl.u32 %v353, 16
    %v378 = vand.u32 %v348, 65535
    %v379 = vshrl.u32 %v348, 16
    %v380 = vmul.u32 %v376, %v378
    %v381 = vmul.u32 %v376, %v379
    %v382 = vmul.u32 %v377, %v378
    %v383 = vmul.u32 %v377, %v379
    %v384 = vshll.u32 %v381, 16
    %v385 = vshrl.u32 %v381, 16
    %v386 = vshll.u32 %v382, 16
    %v387 = vshrl.u32 %v382, 16
    %vm388 = vc.u32 %v380, %v384
    %v389 = vsel %vm388, 1, 0
    %v390 = vadd.s32 %v380, %v384
    %v391 = vadd.s32 %v383, %v389
    %vm392 = vc.u32 %v390, %v386
    %v393 = vsel %vm392, 1, 0
    %v394 = vadd.s32 %v390, %v386
    %v395 = vadd.s32 %v391, %v393
    %v396 = vadd.s32 %v395, %v385
    %v397 = vadd.s32 %v396, %v387
    %v398 = vmul.u32 %v353, %v344
    %v399 = vadd.s32 %v375, %v394
    %vm400 = vc.u32 %v375, %v394
    %v401 = vadd.s32 %v397, 1
    %v402 = vsel %vm400, %v401, %v397
    %v403 = vadd.s32 %v398, %v402
    %v404 = vadd.s32 %v403, 536870912
    %v405 = vshrl.u32 %v404, 30
    %v406 = vshll.u32 %v405, 30
    %v407 = vsub.s32 %v403, %v406
    %vm408 = vcmp.lt.s32.totalorder %v407, 0
    %v409 = vsub.s32 0, %v407
    %v410 = vsel %vm408, %v409, %v407
    %v411 = vclz %v410
    %v412 = vsub.s32 %v411, 2
    %vm413 = vcmp.gt.s32.totalorder 0, %v412
    %v414 = vsel %vm413, 0, %v412
    %v415 = vsub.s32 32, %v414
    %v416 = vshll.u32 %v407, %v414
    %v417 = vshrl.u32 %v399, %v415
    %v418 = vor.u32 %v416, %v417
    %v419 = vsub.s32 4294967266, %v414
    %v420 = vadd.s32 %v419, 127
    %v421 = vshll.u32 %v420, 23
    %v422 = vor.u32 4788187, %v421
    %v423 = vand.u32 2147483647, %v422
    %v425 = vcvt.s32.f32 %v418
    %v426 = vmul.f32 %v425, %v423
    %v427 = vxor.u32 %v426, 2147483648
    %v428 = vsel %vm307, %v427, %v426
    %v429 = vsub.s32 4, %v405
    %v430 = vsel %vm307, %v429, %v405
    %v431 = vsel %vm306, %v107, %v428
    %v432 = vsel %vm306, 0, %v430
    %v433 = vmul.f32 %v431, %v431
    %v434 = vmul.f32 %v433, -0.001358992
    %v435 = vadd.f32 %v434, 0.041655596
    %v436 = vmul.f32 %v433, %v435
    %v437 = vadd.f32 %v436, -0.4999988
    %v438 = vmul.f32 %v433, %v437
    %v439 = vadd.f32 1.0, %v438
    %v440 = vmul.f32 %v431, %v431
    %v441 = vmul.f32 %v440, -0.00019511016
    %v442 = vadd.f32 %v441, 0.008332121
    %v443 = vmul.f32 %v440, %v442
    %v444 = vadd.f32 %v443, -0.16666654
    %v445 = vmul.f32 %v440, %v444
    %v446 = vadd.f32 %v445, 1.0
    %v447 = vmul.f32 %v446, %v431
    %vm448 = vweird.f32 %v107
    %v449 = vand.u32 %v432, 3
    %vm450 = vcmp.lt.s32.totalorder %v449, 2
    %vm451 = vcmp.eq.s32.totalorder %v449, 0
    %v452 = vxor.u32 %v447, 2147483648
    %v453 = vsel %vm451, %v439, %v452
    %vm454 = vcmp.eq.s32.totalorder %v449, 2
    %v455 = vxor.u32 %v439, 2147483648
    %v456 = vsel %vm454, %v455, %v447
    %v457 = vsel %vm450, %v453, %v456
    %v458 = vsel %vm448, nan, %v457
    %v459 = vand.u32 2147483647, %v110
    %vm460 = vcmp.le.f32.partialorder %v459, 0.7853982
    %vm461 = vcmp.lt.s32.totalorder %v110, 0
    %v462 = vand.u32 %v110, 2139095040
    %v463 = vshrl.u32 %v462, 23
    %v464 = vsub.s32 %v463, 127
    %v465 = vand.u32 2147483647, %v110
    %v466 = vand.u32 %v465, 8388607
    %v467 = vor.u32 %v466, 8388608
    %v468 = vsub.s32 0, %v467
    %v469 = vadd.s32 %v464, 1
    %vm470 = vcmp.gt.s32.totalorder %v469, 0
    %v471 = vsel %vm470, %v469, 0
    %v472 = vshrl.u32 %v471, 5
    %v473 = vand.u32 %v471, 31
    %v474 = vsub.s32 32, %v473
    %v475 = vshrl.u32 683565275, %v474
    %v476 = vshll.u32 683565275, %v473
    %v477 = vshrl.u32 2475754826, %v474
    %v478 = vor.u32 %v476, %v477
    %v479 = vshll.u32 2475754826, %v473
    %v480 = vshrl.u32 2131351028, %v474
    %v481 = vor.u32 %v479, %v480
    %v482 = vshll.u32 2131351028, %v473
    %v483 = vshrl.u32 2102212464, %v474
    %v484 = vor.u32 %v482, %v483
    %v485 = vshll.u32 2102212464, %v473
    %v486 = vshrl.u32 920167782, %v474
    %v487 = vor.u32 %v485, %v486
    %v488 = vshll.u32 920167782, %v473
    %v489 = vshrl.u32 1326507024, %v474
    %v490 = vor.u32 %v488, %v489
    %vm491 = vcmp.lt.s32.totalorder %v472, 1
    %vm492 = vcmp.lt.s32.totalorder %v472, 2
    %vm493 = vcmp.lt.s32.totalorder %v472, 3
    %vm494 = vcmp.lt.s32.totalorder %v472, 4
    %v495 = vsel %vm491, %v475, %v478
    %v496 = vsel %vm494, %v484, 2102212464
    %v497 = vsel %vm493, %v481, %v496
    %v498 = vsel %vm492, %v495, %v497
    %v499 = vsel %vm491, %v478, %v481
    %v500 = vsel %vm494, %v487, 920167782
    %v501 = vsel %vm493, %v484, %v500
    %v502 = vsel %vm492, %v499, %v501
    %v503 = vsel %vm491, %v481, %v484
    %v504 = vsel %vm494, %v490, 1326507024
    %v505 = vsel %vm493, %v487, %v504
    %v506 = vsel %vm492, %v503, %v505
    %v507 = vshll.u32 %v467, 8
    %v508 = vand.u32 %v507, 65535
    %v509 = vshrl.u32 %v507, 16
    %v510 = vand.u32 %v506, 65535
    %v511 = vshrl.u32 %v506, 16
    %v512 = vmul.u32 %v508, %v510
    %v513 = vmul.u32 %v508, %v511
    %v514 = vmul.u32 %v509, %v510
    %v515 = vmul.u32 %v509, %v511
    %v516 = vshll.u32 %v513, 16
    %v517 = vshrl.u32 %v513, 16
    %v518 = vshll.u32 %v514, 16
    %v519 = vshrl.u32 %v514, 16
    %vm520 = vc.u32 %v512, %v516
    %v521 = vsel %vm520, 1, 0
    %v522 = vadd.s32 %v512, %v516
    %v523 = vadd.s32 %v515, %v521
    %vm524 = vc.u32 %v522, %v518
    %v525 = vsel %vm524, 1, 0
    %v526 = vadd.s32 %v522, %v518
    %v527 = vadd.s32 %v523, %v525
    %v528 = vadd.s32 %v527, %v517
    %v529 = vadd.s32 %v528, %v519
    %v530 = vand.u32 %v507, 65535
    %v531 = vshrl.u32 %v507, 16
    %v532 = vand.u32 %v502, 65535
    %v533 = vshrl.u32 %v502, 16
    %v534 = vmul.u32 %v530, %v532
    %v535 = vmul.u32 %v530, %v533
    %v536 = vmul.u32 %v531, %v532
    %v537 = vmul.u32 %v531, %v533
    %v538 = vshll.u32 %v535, 16
    %v539 = vshrl.u32 %v535, 16
    %v540 = vshll.u32 %v536, 16
    %v541 = vshrl.u32 %v536, 16
    %vm542 = vc.u32 %v534, %v538
    %v543 = vsel %vm542, 1, 0
    %v544 = vadd.s32 %v534, %v538
    %v545 = vadd.s32 %v537, %v543
    %vm546 = vc.u32 %v544, %v540
    %v547 = vsel %vm546, 1, 0
    %v548 = vadd.s32 %v544, %v540
    %v549 = vadd.s32 %v545, %v547
    %v550 = vadd.s32 %v549, %v539
    %v551 = vadd.s32 %v550, %v541
    %v552 = vmul.u32 %v507, %v498
    %v553 = vadd.s32 %v529, %v548
    %vm554 = vc.u32 %v529, %v548
    %v555 = vadd.s32 %v551, 1
    %v556 = vsel %vm554, %v555, %v551
    %v557 = vadd.s32 %v552, %v556
    %v558 = vadd.s32 %v557, 536870912
    %v559 = vshrl.u32 %v558, 30
    %v560 = vshll.u32 %v559, 30
    %v561 = vsub.s32 %v557, %v560
    %vm562 = vcmp.lt.s32.totalorder %v561, 0
    %v563 = vsub.s32 0, %v561
    %v564 = vsel %vm562, %v563, %v561
    %v565 = vclz %v564
    %v566 = vsub.s32 %v565, 2
    %vm567 = vcmp.gt.s32.totalorder 0, %v566
    %v568 = vsel %vm567, 0, %v566
    %v569 = vsub.s32 32, %v568
    %v570 = vshll.u32 %v561, %v568
    %v571 = vshrl.u32 %v553, %v569
    %v572 = vor.u32 %v570, %v571
    %v573 = vsub.s32 4294967266, %v568
    %v574 = vadd.s32 %v573, 127
    %v575 = vshll.u32 %v574, 23
    %v576 = vor.u32 4788187, %v575
    %v577 = vand.u32 2147483647, %v576
    %v579 = vcvt.s32.f32 %v572
    %v580 = vmul.f32 %v579, %v577
    %v581 = vxor.u32 %v580, 2147483648
    %v582 = vsel %vm461, %v581, %v580
    %v583 = vsub.s32 4, %v559
    %v584 = vsel %vm461, %v583, %v559
    %v585 = vsel %vm460, %v110, %v582
    %v586 = vsel %vm460, 0, %v584
    %v587 = vmul.f32 %v585, %v585
    %v588 = vmul.f32 %v587, -0.001358992
    %v589 = vadd.f32 %v588, 0.041655596
    %v590 = vmul.f32 %v587, %v589
    %v591 = vadd.f32 %v590, -0.4999988
    %v592 = vmul.f32 %v587, %v591
    %v593 = vadd.f32 1.0, %v592
    %v594 = vmul.f32 %v585, %v585
    %v595 = vmul.f32 %v594, -0.00019511016
    %v596 = vadd.f32 %v595, 0.008332121
    %v597 = vmul.f32 %v594, %v596
    %v598 = vadd.f32 %v597, -0.16666654
    %v599 = vmul.f32 %v594, %v598
    %v600 = vadd.f32 %v599, 1.0
    %v601 = vmul.f32 %v600, %v585
    %vm602 = vweird.f32 %v110
    %v603 = vand.u32 %v586, 3
    %vm604 = vcmp.lt.s32.totalorder %v603, 2
    %vm605 = vcmp.eq.s32.totalorder %v603, 0
    %v606 = vxor.u32 %v601, 2147483648
    %v607 = vsel %vm605, %v593, %v606
    %vm608 = vcmp.eq.s32.totalorder %v603, 2
    %v609 = vxor.u32 %v593, 2147483648
    %v610 = vsel %vm608, %v609, %v601
    %v611 = vsel %vm604, %v607, %v610
    %v612 = vsel %vm602, nan, %v611
    %v613 = vand.u32 2147483647, %v113
    %vm614 = vcmp.le.f32.partialorder %v613, 0.7853982
    %vm615 = vcmp.lt.s32.totalorder %v113, 0
    %v616 = vand.u32 %v113, 2139095040
    %v617 = vshrl.u32 %v616, 23
    %v618 = vsub.s32 %v617, 127
    %v619 = vand.u32 2147483647, %v113
    %v620 = vand.u32 %v619, 8388607
    %v621 = vor.u32 %v620, 8388608
    %v622 = vsub.s32 0, %v621
    %v623 = vadd.s32 %v618, 1
    %vm624 = vcmp.gt.s32.totalorder %v623, 0
    %v625 = vsel %vm624, %v623, 0
    %v626 = vshrl.u32 %v625, 5
    %v627 = vand.u32 %v625, 31
    %v628 = vsub.s32 32, %v627
    %v629 = vshrl.u32 683565275, %v628
    %v630 = vshll.u32 683565275, %v627
    %v631 = vshrl.u32 2475754826, %v628
    %v632 = vor.u32 %v630, %v631
    %v633 = vshll.u32 2475754826, %v627
    %v634 = vshrl.u32 2131351028, %v628
    %v635 = vor.u32 %v633, %v634
    %v636 = vshll.u32 2131351028, %v627
    %v637 = vshrl.u32 2102212464, %v628
    %v638 = vor.u32 %v636, %v637
    %v639 = vshll.u32 2102212464, %v627
    %v640 = vshrl.u32 920167782, %v628
    %v641 = vor.u32 %v639, %v640
    %v642 = vshll.u32 920167782, %v627
    %v643 = vshrl.u32 1326507024, %v628
    %v644 = vor.u32 %v642, %v643
    %vm645 = vcmp.lt.s32.totalorder %v626, 1
    %vm646 = vcmp.lt.s32.totalorder %v626, 2
    %vm647 = vcmp.lt.s32.totalorder %v626, 3
    %vm648 = vcmp.lt.s32.totalorder %v626, 4
    %v649 = vsel %vm645, %v629, %v632
    %v650 = vsel %vm648, %v638, 2102212464
    %v651 = vsel %vm647, %v635, %v650
    %v652 = vsel %vm646, %v649, %v651
    %v653 = vsel %vm645, %v632, %v635
    %v654 = vsel %vm648, %v641, 920167782
    %v655 = vsel %vm647, %v638, %v654
    %v656 = vsel %vm646, %v653, %v655
    %v657 = vsel %vm645, %v635, %v638
    %v658 = vsel %vm648, %v644, 1326507024
    %v659 = vsel %vm647, %v641, %v658
    %v660 = vsel %vm646, %v657, %v659
    %v661 = vshll.u32 %v621, 8
    %v662 = vand.u32 %v661, 65535
    %v663 = vshrl.u32 %v661, 16
    %v664 = vand.u32 %v660, 65535
    %v665 = vshrl.u32 %v660, 16
    %v666 = vmul.u32 %v662, %v664
    %v667 = vmul.u32 %v662, %v665
    %v668 = vmul.u32 %v663, %v664
    %v669 = vmul.u32 %v663, %v665
    %v670 = vshll.u32 %v667, 16
    %v671 = vshrl.u32 %v667, 16
    %v672 = vshll.u32 %v668, 16
    %v673 = vshrl.u32 %v668, 16
    %vm674 = vc.u32 %v666, %v670
    %v675 = vsel %vm674, 1, 0
    %v676 = vadd.s32 %v666, %v670
    %v677 = vadd.s32 %v669, %v675
    %vm678 = vc.u32 %v676, %v672
    %v679 = vsel %vm678, 1, 0
    %v680 = vadd.s32 %v676, %v672
    %v681 = vadd.s32 %v677, %v679
    %v682 = vadd.s32 %v681, %v671
    %v683 = vadd.s32 %v682, %v673
    %v684 = vand.u32 %v661, 65535
    %v685 = vshrl.u32 %v661, 16
    %v686 = vand.u32 %v656, 65535
    %v687 = vshrl.u32 %v656, 16
    %v688 = vmul.u32 %v684, %v686
    %v689 = vmul.u32 %v684, %v687
    %v690 = vmul.u32 %v685, %v686
    %v691 = vmul.u32 %v685, %v687
    %v692 = vshll.u32 %v689, 16
    %v693 = vshrl.u32 %v689, 16
    %v694 = vshll.u32 %v690, 16
    %v695 = vshrl.u32 %v690, 16
    %vm696 = vc.u32 %v688, %v692
    %v697 = vsel %vm696, 1, 0
    %v698 = vadd.s32 %v688, %v692
    %v699 = vadd.s32 %v691, %v697
    %vm700 = vc.u32 %v698, %v694
    %v701 = vsel %vm700, 1, 0
    %v702 = vadd.s32 %v698, %v694
    %v703 = vadd.s32 %v699, %v701
    %v704 = vadd.s32 %v703, %v693
    %v705 = vadd.s32 %v704, %v695
    %v706 = vmul.u32 %v661, %v652
    %v707 = vadd.s32 %v683, %v702
    %vm708 = vc.u32 %v683, %v702
    %v709 = vadd.s32 %v705, 1
    %v710 = vsel %vm708, %v709, %v705
    %v711 = vadd.s32 %v706, %v710
    %v712 = vadd.s32 %v711, 536870912
    %v713 = vshrl.u32 %v712, 30
    %v714 = vshll.u32 %v713, 30
    %v715 = vsub.s32 %v711, %v714
    %vm716 = vcmp.lt.s32.totalorder %v715, 0
    %v717 = vsub.s32 0, %v715
    %v718 = vsel %vm716, %v717, %v715
    %v719 = vclz %v718
    %v720 = vsub.s32 %v719, 2
    %vm721 = vcmp.gt.s32.totalorder 0, %v720
    %v722 = vsel %vm721, 0, %v720
    %v723 = vsub.s32 32, %v722
    %v724 = vshll.u32 %v715, %v722
    %v725 = vshrl.u32 %v707, %v723
    %v726 = vor.u32 %v724, %v725
    %v727 = vsub.s32 4294967266, %v722
    %v728 = vadd.s32 %v727, 127
    %v729 = vshll.u32 %v728, 23
    %v730 = vor.u32 4788187, %v729
    %v731 = vand.u32 2147483647, %v730
    %v733 = vcvt.s32.f32 %v726
    %v734 = vmul.f32 %v733, %v731
    %v735 = vxor.u32 %v734, 2147483648
    %v736 = vsel %vm615, %v735, %v734
    %v737 = vsub.s32 4, %v713
    %v738 = vsel %vm615, %v737, %v713
    %v739 = vsel %vm614, %v113, %v736
    %v740 = vsel %vm614, 0, %v738
    %v741 = vmul.f32 %v739, %v739
    %v742 = vmul.f32 %v741, -0.001358992
    %v743 = vadd.f32 %v742, 0.041655596
    %v744 = vmul.f32 %v741, %v743
    %v745 = vadd.f32 %v744, -0.4999988
    %v746 = vmul.f32 %v741, %v745
    %v747 = vadd.f32 1.0, %v746
    %v748 = vmul.f32 %v739, %v739
    %v749 = vmul.f32 %v748, -0.00019511016
    %v750 = vadd.f32 %v749, 0.008332121
    %v751 = vmul.f32 %v748, %v750
    %v752 = vadd.f32 %v751, -0.16666654
    %v753 = vmul.f32 %v748, %v752
    %v754 = vadd.f32 %v753, 1.0
    %v755 = vmul.f32 %v754, %v739
    %vm756 = vweird.f32 %v113
    %v757 = vand.u32 %v740, 3
    %vm758 = vcmp.lt.s32.totalorder %v757, 2
    %vm759 = vcmp.eq.s32.totalorder %v757, 0
    %v760 = vxor.u32 %v755, 2147483648
    %v761 = vsel %vm759, %v747, %v760
    %vm762 = vcmp.eq.s32.totalorder %v757, 2
    %v763 = vxor.u32 %v747, 2147483648
    %v764 = vsel %vm762, %v763, %v755
    %v765 = vsel %vm758, %v761, %v764
    %v766 = vsel %vm756, nan, %v765
    %v767 = vand.u32 2147483647, %v116
    %vm768 = vcmp.le.f32.partialorder %v767, 0.7853982
    %vm769 = vcmp.lt.s32.totalorder %v116, 0
    %v770 = vand.u32 %v116, 2139095040
    %v771 = vshrl.u32 %v770, 23
    %v772 = vsub.s32 %v771, 127
    %v773 = vand.u32 2147483647, %v116
    %v774 = vand.u32 %v773, 8388607
    %v775 = vor.u32 %v774, 8388608
    %v776 = vsub.s32 0, %v775
    %v777 = vadd.s32 %v772, 1
    %vm778 = vcmp.gt.s32.totalorder %v777, 0
    %v779 = vsel %vm778, %v777, 0
    %v780 = vshrl.u32 %v779, 5
    %v781 = vand.u32 %v779, 31
    %v782 = vsub.s32 32, %v781
    %v783 = vshrl.u32 683565275, %v782
    %v784 = vshll.u32 683565275, %v781
    %v785 = vshrl.u32 2475754826, %v782
    %v786 = vor.u32 %v784, %v785
    %v787 = vshll.u32 2475754826, %v781
    %v788 = vshrl.u32 2131351028, %v782
    %v789 = vor.u32 %v787, %v788
    %v790 = vshll.u32 2131351028, %v781
    %v791 = vshrl.u32 2102212464, %v782
    %v792 = vor.u32 %v790, %v791
    %v793 = vshll.u32 2102212464, %v781
    %v794 = vshrl.u32 920167782, %v782
    %v795 = vor.u32 %v793, %v794
    %v796 = vshll.u32 920167782, %v781
    %v797 = vshrl.u32 1326507024, %v782
    %v798 = vor.u32 %v796, %v797
    %vm799 = vcmp.lt.s32.totalorder %v780, 1
    %vm800 = vcmp.lt.s32.totalorder %v780, 2
    %vm801 = vcmp.lt.s32.totalorder %v780, 3
    %vm802 = vcmp.lt.s32.totalorder %v780, 4
    %v803 = vsel %vm799, %v783, %v786
    %v804 = vsel %vm802, %v792, 2102212464
    %v805 = vsel %vm801, %v789, %v804
    %v806 = vsel %vm800, %v803, %v805
    %v807 = vsel %vm799, %v786, %v789
    %v808 = vsel %vm802, %v795, 920167782
    %v809 = vsel %vm801, %v792, %v808
    %v810 = vsel %vm800, %v807, %v809
    %v811 = vsel %vm799, %v789, %v792
    %v812 = vsel %vm802, %v798, 1326507024
    %v813 = vsel %vm801, %v795, %v812
    %v814 = vsel %vm800, %v811, %v813
    %v815 = vshll.u32 %v775, 8
    %v816 = vand.u32 %v815, 65535
    %v817 = vshrl.u32 %v815, 16
    %v818 = vand.u32 %v814, 65535
    %v819 = vshrl.u32 %v814, 16
    %v820 = vmul.u32 %v816, %v818
    %v821 = vmul.u32 %v816, %v819
    %v822 = vmul.u32 %v817, %v818
    %v823 = vmul.u32 %v817, %v819
    %v824 = vshll.u32 %v821, 16
    %v825 = vshrl.u32 %v821, 16
    %v826 = vshll.u32 %v822, 16
    %v827 = vshrl.u32 %v822, 16
    %vm828 = vc.u32 %v820, %v824
    %v829 = vsel %vm828, 1, 0
    %v830 = vadd.s32 %v820, %v824
    %v831 = vadd.s32 %v823, %v829
    %vm832 = vc.u32 %v830, %v826
    %v833 = vsel %vm832, 1, 0
    %v834 = vadd.s32 %v830, %v826
    %v835 = vadd.s32 %v831, %v833
    %v836 = vadd.s32 %v835, %v825
    %v837 = vadd.s32 %v836, %v827
    %v838 = vand.u32 %v815, 65535
    %v839 = vshrl.u32 %v815, 16
    %v840 = vand.u32 %v810, 65535
    %v841 = vshrl.u32 %v810, 16
    %v842 = vmul.u32 %v838, %v840
    %v843 = vmul.u32 %v838, %v841
    %v844 = vmul.u32 %v839, %v840
    %v845 = vmul.u32 %v839, %v841
    %v846 = vshll.u32 %v843, 16
    %v847 = vshrl.u32 %v843, 16
    %v848 = vshll.u32 %v844, 16
    %v849 = vshrl.u32 %v844, 16
    %vm850 = vc.u32 %v842, %v846
    %v851 = vsel %vm850, 1, 0
    %v852 = vadd.s32 %v842, %v846
    %v853 = vadd.s32 %v845, %v851
    %vm854 = vc.u32 %v852, %v848
    %v855 = vsel %vm854, 1, 0
    %v856 = vadd.s32 %v852, %v848
    %v857 = vadd.s32 %v853, %v855
    %v858 = vadd.s32 %v857, %v847
    %v859 = vadd.s32 %v858, %v849
    %v860 = vmul.u32 %v815, %v806
    %v861 = vadd.s32 %v837, %v856
    %vm862 = vc.u32 %v837, %v856
    %v863 = vadd.s32 %v859, 1
    %v864 = vsel %vm862, %v863, %v859
    %v865 = vadd.s32 %v860, %v864
    %v866 = vadd.s32 %v865, 536870912
    %v867 = vshrl.u32 %v866, 30
    %v868 = vshll.u32 %v867, 30
    %v869 = vsub.s32 %v865, %v868
    %vm870 = vcmp.lt.s32.totalorder %v869, 0
    %v871 = vsub.s32 0, %v869
    %v872 = vsel %vm870, %v871, %v869
    %v873 = vclz %v872
    %v874 = vsub.s32 %v873, 2
    %vm875 = vcmp.gt.s32.totalorder 0, %v874
    %v876 = vsel %vm875, 0, %v874
    %v877 = vsub.s32 32, %v876
    %v878 = vshll.u32 %v869, %v876
    %v879 = vshrl.u32 %v861, %v877
    %v880 = vor.u32 %v878, %v879
    %v881 = vsub.s32 4294967266, %v876
    %v882 = vadd.s32 %v881, 127
    %v883 = vshll.u32 %v882, 23
    %v884 = vor.u32 4788187, %v883
    %v885 = vand.u32 2147483647, %v884
    %v887 = vcvt.s32.f32 %v880
    %v888 = vmul.f32 %v887, %v885
    %v889 = vxor.u32 %v888, 2147483648
    %v890 = vsel %vm769, %v889, %v888
    %v891 = vsub.s32 4, %v867
    %v892 = vsel %vm769, %v891, %v867
    %v893 = vsel %vm768, %v116, %v890
    %v894 = vsel %vm768, 0, %v892
    %v895 = vmul.f32 %v893, %v893
    %v896 = vmul.f32 %v895, -0.001358992
    %v897 = vadd.f32 %v896, 0.041655596
    %v898 = vmul.f32 %v895, %v897
    %v899 = vadd.f32 %v898, -0.4999988
    %v900 = vmul.f32 %v895, %v899
    %v901 = vadd.f32 1.0, %v900
    %v902 = vmul.f32 %v893, %v893
    %v903 = vmul.f32 %v902, -0.00019511016
    %v904 = vadd.f32 %v903, 0.008332121
    %v905 = vmul.f32 %v902, %v904
    %v906 = vadd.f32 %v905, -0.16666654
    %v907 = vmul.f32 %v902, %v906
    %v908 = vadd.f32 %v907, 1.0
    %v909 = vmul.f32 %v908, %v893
    %vm910 = vweird.f32 %v116
    %v911 = vand.u32 %v894, 3
    %vm912 = vcmp.lt.s32.totalorder %v911, 2
    %vm913 = vcmp.eq.s32.totalorder %v911, 0
    %v914 = vxor.u32 %v909, 2147483648
    %v915 = vsel %vm913, %v901, %v914
    %vm916 = vcmp.eq.s32.totalorder %v911, 2
    %v917 = vxor.u32 %v901, 2147483648
    %v918 = vsel %vm916, %v917, %v909
    %v919 = vsel %vm912, %v915, %v918
    %v920 = vsel %vm910, nan, %v919
    %v921 = vand.u32 2147483647, %v119
    %vm922 = vcmp.le.f32.partialorder %v921, 0.7853982
    %vm923 = vcmp.lt.s32.totalorder %v119, 0
    %v924 = vand.u32 %v119, 2139095040
    %v925 = vshrl.u32 %v924, 23
    %v926 = vsub.s32 %v925, 127
    %v927 = vand.u32 2147483647, %v119
    %v928 = vand.u32 %v927, 8388607
    %v929 = vor.u32 %v928, 8388608
    %v930 = vsub.s32 0, %v929
    %v931 = vadd.s32 %v926, 1
    %vm932 = vcmp.gt.s32.totalorder %v931, 0
    %v933 = vsel %vm932, %v931, 0
    %v934 = vshrl.u32 %v933, 5
    %v935 = vand.u32 %v933, 31
    %v936 = vsub.s32 32, %v935
    %v937 = vshrl.u32 683565275, %v936
    %v938 = vshll.u32 683565275, %v935
    %v939 = vshrl.u32 2475754826, %v936
    %v940 = vor.u32 %v938, %v939
    %v941 = vshll.u32 2475754826, %v935
    %v942 = vshrl.u32 2131351028, %v936
    %v943 = vor.u32 %v941, %v942
    %v944 = vshll.u32 2131351028, %v935
    %v945 = vshrl.u32 2102212464, %v936
    %v946 = vor.u32 %v944, %v945
    %v947 = vshll.u32 2102212464, %v935
    %v948 = vshrl.u32 920167782, %v936
    %v949 = vor.u32 %v947, %v948
    %v950 = vshll.u32 920167782, %v935
    %v951 = vshrl.u32 1326507024, %v936
    %v952 = vor.u32 %v950, %v951
    %vm953 = vcmp.lt.s32.totalorder %v934, 1
    %vm954 = vcmp.lt.s32.totalorder %v934, 2
    %vm955 = vcmp.lt.s32.totalorder %v934, 3
    %vm956 = vcmp.lt.s32.totalorder %v934, 4
    %v957 = vsel %vm953, %v937, %v940
    %v958 = vsel %vm956, %v946, 2102212464
    %v959 = vsel %vm955, %v943, %v958
    %v960 = vsel %vm954, %v957, %v959
    %v961 = vsel %vm953, %v940, %v943
    %v962 = vsel %vm956, %v949, 920167782
    %v963 = vsel %vm955, %v946, %v962
    %v964 = vsel %vm954, %v961, %v963
    %v965 = vsel %vm953, %v943, %v946
    %v966 = vsel %vm956, %v952, 1326507024
    %v967 = vsel %vm955, %v949, %v966
    %v968 = vsel %vm954, %v965, %v967
    %v969 = vshll.u32 %v929, 8
    %v970 = vand.u32 %v969, 65535
    %v971 = vshrl.u32 %v969, 16
    %v972 = vand.u32 %v968, 65535
    %v973 = vshrl.u32 %v968, 16
    %v974 = vmul.u32 %v970, %v972
    %v975 = vmul.u32 %v970, %v973
    %v976 = vmul.u32 %v971, %v972
    %v977 = vmul.u32 %v971, %v973
    %v978 = vshll.u32 %v975, 16
    %v979 = vshrl.u32 %v975, 16
    %v980 = vshll.u32 %v976, 16
    %v981 = vshrl.u32 %v976, 16
    %vm982 = vc.u32 %v974, %v978
    %v983 = vsel %vm982, 1, 0
    %v984 = vadd.s32 %v974, %v978
    %v985 = vadd.s32 %v977, %v983
    %vm986 = vc.u32 %v984, %v980
    %v987 = vsel %vm986, 1, 0
    %v988 = vadd.s32 %v984, %v980
    %v989 = vadd.s32 %v985, %v987
    %v990 = vadd.s32 %v989, %v979
    %v991 = vadd.s32 %v990, %v981
    %v992 = vand.u32 %v969, 65535
    %v993 = vshrl.u32 %v969, 16
    %v994 = vand.u32 %v964, 65535
    %v995 = vshrl.u32 %v964, 16
    %v996 = vmul.u32 %v992, %v994
    %v997 = vmul.u32 %v992, %v995
    %v998 = vmul.u32 %v993, %v994
    %v999 = vmul.u32 %v993, %v995
    %v1000 = vshll.u32 %v997, 16
    %v1001 = vshrl.u32 %v997, 16
    %v1002 = vshll.u32 %v998, 16
    %v1003 = vshrl.u32 %v998, 16
    %vm1004 = vc.u32 %v996, %v1000
    %v1005 = vsel %vm1004, 1, 0
    %v1006 = vadd.s32 %v996, %v1000
    %v1007 = vadd.s32 %v999, %v1005
    %vm1008 = vc.u32 %v1006, %v1002
    %v1009 = vsel %vm1008, 1, 0
    %v1010 = vadd.s32 %v1006, %v1002
    %v1011 = vadd.s32 %v1007, %v1009
    %v1012 = vadd.s32 %v1011, %v1001
    %v1013 = vadd.s32 %v1012, %v1003
    %v1014 = vmul.u32 %v969, %v960
    %v1015 = vadd.s32 %v991, %v1010
    %vm1016 = vc.u32 %v991, %v1010
    %v1017 = vadd.s32 %v1013, 1
    %v1018 = vsel %vm1016, %v1017, %v1013
    %v1019 = vadd.s32 %v1014, %v1018
    %v1020 = vadd.s32 %v1019, 536870912
    %v1021 = vshrl.u32 %v1020, 30
    %v1022 = vshll.u32 %v1021, 30
    %v1023 = vsub.s32 %v1019, %v1022
    %vm1024 = vcmp.lt.s32.totalorder %v1023, 0
    %v1025 = vsub.s32 0, %v1023
    %v1026 = vsel %vm1024, %v1025, %v1023
    %v1027 = vclz %v1026
    %v1028 = vsub.s32 %v1027, 2
    %vm1029 = vcmp.gt.s32.totalorder 0, %v1028
    %v1030 = vsel %vm1029, 0, %v1028
    %v1031 = vsub.s32 32, %v1030
    %v1032 = vshll.u32 %v1023, %v1030
    %v1033 = vshrl.u32 %v1015, %v1031
    %v1034 = vor.u32 %v1032, %v1033
    %v1035 = vsub.s32 4294967266, %v1030
    %v1036 = vadd.s32 %v1035, 127
    %v1037 = vshll.u32 %v1036, 23
    %v1038 = vor.u32 4788187, %v1037
    %v1039 = vand.u32 2147483647, %v1038
    %v1041 = vcvt.s32.f32 %v1034
    %v1042 = vmul.f32 %v1041, %v1039
    %v1043 = vxor.u32 %v1042, 2147483648
    %v1044 = vsel %vm923, %v1043, %v1042
    %v1045 = vsub.s32 4, %v1021
    %v1046 = vsel %vm923, %v1045, %v1021
    %v1047 = vsel %vm922, %v119, %v1044
    %v1048 = vsel %vm922, 0, %v1046
    %v1049 = vmul.f32 %v1047, %v1047
    %v1050 = vmul.f32 %v1049, -0.001358992
    %v1051 = vadd.f32 %v1050, 0.041655596
    %v1052 = vmul.f32 %v1049, %v1051
    %v1053 = vadd.f32 %v1052, -0.4999988
    %v1054 = vmul.f32 %v1049, %v1053
    %v1055 = vadd.f32 1.0, %v1054
    %v1056 = vmul.f32 %v1047, %v1047
    %v1057 = vmul.f32 %v1056, -0.00019511016
    %v1058 = vadd.f32 %v1057, 0.008332121
    %v1059 = vmul.f32 %v1056, %v1058
    %v1060 = vadd.f32 %v1059, -0.16666654
    %v1061 = vmul.f32 %v1056, %v1060
    %v1062 = vadd.f32 %v1061, 1.0
    %v1063 = vmul.f32 %v1062, %v1047
    %vm1064 = vweird.f32 %v119
    %v1065 = vand.u32 %v1048, 3
    %vm1066 = vcmp.lt.s32.totalorder %v1065, 2
    %vm1067 = vcmp.eq.s32.totalorder %v1065, 0
    %v1068 = vxor.u32 %v1063, 2147483648
    %v1069 = vsel %vm1067, %v1055, %v1068
    %vm1070 = vcmp.eq.s32.totalorder %v1065, 2
    %v1071 = vxor.u32 %v1055, 2147483648
    %v1072 = vsel %vm1070, %v1071, %v1063
    %v1073 = vsel %vm1066, %v1069, %v1072
    %v1074 = vsel %vm1064, nan, %v1073
    %v1075 = vand.u32 2147483647, %v122
    %vm1076 = vcmp.le.f32.partialorder %v1075, 0.7853982
    %vm1077 = vcmp.lt.s32.totalorder %v122, 0
    %v1078 = vand.u32 %v122, 2139095040
    %v1079 = vshrl.u32 %v1078, 23
    %v1080 = vsub.s32 %v1079, 127
    %v1081 = vand.u32 2147483647, %v122
    %v1082 = vand.u32 %v1081, 8388607
    %v1083 = vor.u32 %v1082, 8388608
    %v1084 = vsub.s32 0, %v1083
    %v1085 = vadd.s32 %v1080, 1
    %vm1086 = vcmp.gt.s32.totalorder %v1085, 0
    %v1087 = vsel %vm1086, %v1085, 0
    %v1088 = vshrl.u32 %v1087, 5
    %v1089 = vand.u32 %v1087, 31
    %v1090 = vsub.s32 32, %v1089
    %v1091 = vshrl.u32 683565275, %v1090
    %v1092 = vshll.u32 683565275, %v1089
    %v1093 = vshrl.u32 2475754826, %v1090
    %v1094 = vor.u32 %v1092, %v1093
    %v1095 = vshll.u32 2475754826, %v1089
    %v1096 = vshrl.u32 2131351028, %v1090
    %v1097 = vor.u32 %v1095, %v1096
    %v1098 = vshll.u32 2131351028, %v1089
    %v1099 = vshrl.u32 2102212464, %v1090
    %v1100 = vor.u32 %v1098, %v1099
    %v1101 = vshll.u32 2102212464, %v1089
    %v1102 = vshrl.u32 920167782, %v1090
    %v1103 = vor.u32 %v1101, %v1102
    %v1104 = vshll.u32 920167782, %v1089
    %v1105 = vshrl.u32 1326507024, %v1090
    %v1106 = vor.u32 %v1104, %v1105
    %vm1107 = vcmp.lt.s32.totalorder %v1088, 1
    %vm1108 = vcmp.lt.s32.totalorder %v1088, 2
    %vm1109 = vcmp.lt.s32.totalorder %v1088, 3
    %vm1110 = vcmp.lt.s32.totalorder %v1088, 4
    %v1111 = vsel %vm1107, %v1091, %v1094
    %v1112 = vsel %vm1110, %v1100, 2102212464
    %v1113 = vsel %vm1109, %v1097, %v1112
    %v1114 = vsel %vm1108, %v1111, %v1113
    %v1115 = vsel %vm1107, %v1094, %v1097
    %v1116 = vsel %vm1110, %v1103, 920167782
    %v1117 = vsel %vm1109, %v1100, %v1116
    %v1118 = vsel %vm1108, %v1115, %v1117
    %v1119 = vsel %vm1107, %v1097, %v1100
    %v1120 = vsel %vm1110, %v1106, 1326507024
    %v1121 = vsel %vm1109, %v1103, %v1120
    %v1122 = vsel %vm1108, %v1119, %v1121
    %v1123 = vshll.u32 %v1083, 8
    %v1124 = vand.u32 %v1123, 65535
    %v1125 = vshrl.u32 %v1123, 16
    %v1126 = vand.u32 %v1122, 65535
    %v1127 = vshrl.u32 %v1122, 16
    %v1128 = vmul.u32 %v1124, %v1126
    %v1129 = vmul.u32 %v1124, %v1127
    %v1130 = vmul.u32 %v1125, %v1126
    %v1131 = vmul.u32 %v1125, %v1127
    %v1132 = vshll.u32 %v1129, 16
    %v1133 = vshrl.u32 %v1129, 16
    %v1134 = vshll.u32 %v1130, 16
    %v1135 = vshrl.u32 %v1130, 16
    %vm1136 = vc.u32 %v1128, %v1132
    %v1137 = vsel %vm1136, 1, 0
    %v1138 = vadd.s32 %v1128, %v1132
    %v1139 = vadd.s32 %v1131, %v1137
    %vm1140 = vc.u32 %v1138, %v1134
    %v1141 = vsel %vm1140, 1, 0
    %v1142 = vadd.s32 %v1138, %v1134
    %v1143 = vadd.s32 %v1139, %v1141
    %v1144 = vadd.s32 %v1143, %v1133
    %v1145 = vadd.s32 %v1144, %v1135
    %v1146 = vand.u32 %v1123, 65535
    %v1147 = vshrl.u32 %v1123, 16
    %v1148 = vand.u32 %v1118, 65535
    %v1149 = vshrl.u32 %v1118, 16
    %v1150 = vmul.u32 %v1146, %v1148
    %v1151 = vmul.u32 %v1146, %v1149
    %v1152 = vmul.u32 %v1147, %v1148
    %v1153 = vmul.u32 %v1147, %v1149
    %v1154 = vshll.u32 %v1151, 16
    %v1155 = vshrl.u32 %v1151, 16
    %v1156 = vshll.u32 %v1152, 16
    %v1157 = vshrl.u32 %v1152, 16
    %vm1158 = vc.u32 %v1150, %v1154
    %v1159 = vsel %vm1158, 1, 0
    %v1160 = vadd.s32 %v1150, %v1154
    %v1161 = vadd.s32 %v1153, %v1159
    %vm1162 = vc.u32 %v1160, %v1156
    %v1163 = vsel %vm1162, 1, 0
    %v1164 = vadd.s32 %v1160, %v1156
    %v1165 = vadd.s32 %v1161, %v1163
    %v1166 = vadd.s32 %v1165, %v1155
    %v1167 = vadd.s32 %v1166, %v1157
    %v1168 = vmul.u32 %v1123, %v1114
    %v1169 = vadd.s32 %v1145, %v1164
    %vm1170 = vc.u32 %v1145, %v1164
    %v1171 = vadd.s32 %v1167, 1
    %v1172 = vsel %vm1170, %v1171, %v1167
    %v1173 = vadd.s32 %v1168, %v1172
    %v1174 = vadd.s32 %v1173, 536870912
    %v1175 = vshrl.u32 %v1174, 30
    %v1176 = vshll.u32 %v1175, 30
    %v1177 = vsub.s32 %v1173, %v1176
    %vm1178 = vcmp.lt.s32.totalorder %v1177, 0
    %v1179 = vsub.s32 0, %v1177
    %v1180 = vsel %vm1178, %v1179, %v1177
    %v1181 = vclz %v1180
    %v1182 = vsub.s32 %v1181, 2
    %vm1183 = vcmp.gt.s32.totalorder 0, %v1182
    %v1184 = vsel %vm1183, 0, %v1182
    %v1185 = vsub.s32 32, %v1184
    %v1186 = vshll.u32 %v1177, %v1184
    %v1187 = vshrl.u32 %v1169, %v1185
    %v1188 = vor.u32 %v1186, %v1187
    %v1189 = vsub.s32 4294967266, %v1184
    %v1190 = vadd.s32 %v1189, 127
    %v1191 = vshll.u32 %v1190, 23
    %v1192 = vor.u32 4788187, %v1191
    %v1193 = vand.u32 2147483647, %v1192
    %v1195 = vcvt.s32.f32 %v1188
    %v1196 = vmul.f32 %v1195, %v1193
    %v1197 = vxor.u32 %v1196, 2147483648
    %v1198 = vsel %vm1077, %v1197, %v1196
    %v1199 = vsub.s32 4, %v1175
    %v1200 = vsel %vm1077, %v1199, %v1175
    %v1201 = vsel %vm1076, %v122, %v1198
    %v1202 = vsel %vm1076, 0, %v1200
    %v1203 = vmul.f32 %v1201, %v1201
    %v1204 = vmul.f32 %v1203, -0.001358992
    %v1205 = vadd.f32 %v1204, 0.041655596
    %v1206 = vmul.f32 %v1203, %v1205
    %v1207 = vadd.f32 %v1206, -0.4999988
    %v1208 = vmul.f32 %v1203, %v1207
    %v1209 = vadd.f32 1.0, %v1208
    %v1210 = vmul.f32 %v1201, %v1201
    %v1211 = vmul.f32 %v1210, -0.00019511016
    %v1212 = vadd.f32 %v1211, 0.008332121
    %v1213 = vmul.f32 %v1210, %v1212
    %v1214 = vadd.f32 %v1213, -0.16666654
    %v1215 = vmul.f32 %v1210, %v1214
    %v1216 = vadd.f32 %v1215, 1.0
    %v1217 = vmul.f32 %v1216, %v1201
    %vm1218 = vweird.f32 %v122
    %v1219 = vand.u32 %v1202, 3
    %vm1220 = vcmp.lt.s32.totalorder %v1219, 2
    %vm1221 = vcmp.eq.s32.totalorder %v1219, 0
    %v1222 = vxor.u32 %v1217, 2147483648
    %v1223 = vsel %vm1221, %v1209, %v1222
    %vm1224 = vcmp.eq.s32.totalorder %v1219, 2
    %v1225 = vxor.u32 %v1209, 2147483648
    %v1226 = vsel %vm1224, %v1225, %v1217
    %v1227 = vsel %vm1220, %v1223, %v1226
    %v1228 = vsel %vm1218, nan, %v1227
    %v1229 = vand.u32 2147483647, %v125
    %vm1230 = vcmp.le.f32.partialorder %v1229, 0.7853982
    %vm1231 = vcmp.lt.s32.totalorder %v125, 0
    %v1232 = vand.u32 %v125, 2139095040
    %v1233 = vshrl.u32 %v1232, 23
    %v1234 = vsub.s32 %v1233, 127
    %v1235 = vand.u32 2147483647, %v125
    %v1236 = vand.u32 %v1235, 8388607
    %v1237 = vor.u32 %v1236, 8388608
    %v1238 = vsub.s32 0, %v1237
    %v1239 = vadd.s32 %v1234, 1
    %vm1240 = vcmp.gt.s32.totalorder %v1239, 0
    %v1241 = vsel %vm1240, %v1239, 0
    %v1242 = vshrl.u32 %v1241, 5
    %v1243 = vand.u32 %v1241, 31
    %v1244 = vsub.s32 32, %v1243
    %v1245 = vshrl.u32 683565275, %v1244
    %v1246 = vshll.u32 683565275, %v1243
    %v1247 = vshrl.u32 2475754826, %v1244
    %v1248 = vor.u32 %v1246, %v1247
    %v1249 = vshll.u32 2475754826, %v1243
    %v1250 = vshrl.u32 2131351028, %v1244
    %v1251 = vor.u32 %v1249, %v1250
    %v1252 = vshll.u32 2131351028, %v1243
    %v1253 = vshrl.u32 2102212464, %v1244
    %v1254 = vor.u32 %v1252, %v1253
    %v1255 = vshll.u32 2102212464, %v1243
    %v1256 = vshrl.u32 920167782, %v1244
    %v1257 = vor.u32 %v1255, %v1256
    %v1258 = vshll.u32 920167782, %v1243
    %v1259 = vshrl.u32 1326507024, %v1244
    %v1260 = vor.u32 %v1258, %v1259
    %vm1261 = vcmp.lt.s32.totalorder %v1242, 1
    %vm1262 = vcmp.lt.s32.totalorder %v1242, 2
    %vm1263 = vcmp.lt.s32.totalorder %v1242, 3
    %vm1264 = vcmp.lt.s32.totalorder %v1242, 4
    %v1265 = vsel %vm1261, %v1245, %v1248
    %v1266 = vsel %vm1264, %v1254, 2102212464
    %v1267 = vsel %vm1263, %v1251, %v1266
    %v1268 = vsel %vm1262, %v1265, %v1267
    %v1269 = vsel %vm1261, %v1248, %v1251
    %v1270 = vsel %vm1264, %v1257, 920167782
    %v1271 = vsel %vm1263, %v1254, %v1270
    %v1272 = vsel %vm1262, %v1269, %v1271
    %v1273 = vsel %vm1261, %v1251, %v1254
    %v1274 = vsel %vm1264, %v1260, 1326507024
    %v1275 = vsel %vm1263, %v1257, %v1274
    %v1276 = vsel %vm1262, %v1273, %v1275
    %v1277 = vshll.u32 %v1237, 8
    %v1278 = vand.u32 %v1277, 65535
    %v1279 = vshrl.u32 %v1277, 16
    %v1280 = vand.u32 %v1276, 65535
    %v1281 = vshrl.u32 %v1276, 16
    %v1282 = vmul.u32 %v1278, %v1280
    %v1283 = vmul.u32 %v1278, %v1281
    %v1284 = vmul.u32 %v1279, %v1280
    %v1285 = vmul.u32 %v1279, %v1281
    %v1286 = vshll.u32 %v1283, 16
    %v1287 = vshrl.u32 %v1283, 16
    %v1288 = vshll.u32 %v1284, 16
    %v1289 = vshrl.u32 %v1284, 16
    %vm1290 = vc.u32 %v1282, %v1286
    %v1291 = vsel %vm1290, 1, 0
    %v1292 = vadd.s32 %v1282, %v1286
    %v1293 = vadd.s32 %v1285, %v1291
    %vm1294 = vc.u32 %v1292, %v1288
    %v1295 = vsel %vm1294, 1, 0
    %v1296 = vadd.s32 %v1292, %v1288
    %v1297 = vadd.s32 %v1293, %v1295
    %v1298 = vadd.s32 %v1297, %v1287
    %v1299 = vadd.s32 %v1298, %v1289
    %v1300 = vand.u32 %v1277, 65535
    %v1301 = vshrl.u32 %v1277, 16
    %v1302 = vand.u32 %v1272, 65535
    %v1303 = vshrl.u32 %v1272, 16
    %v1304 = vmul.u32 %v1300, %v1302
    %v1305 = vmul.u32 %v1300, %v1303
    %v1306 = vmul.u32 %v1301, %v1302
    %v1307 = vmul.u32 %v1301, %v1303
    %v1308 = vshll.u32 %v1305, 16
    %v1309 = vshrl.u32 %v1305, 16
    %v1310 = vshll.u32 %v1306, 16
    %v1311 = vshrl.u32 %v1306, 16
    %vm1312 = vc.u32 %v1304, %v1308
    %v1313 = vsel %vm1312, 1, 0
    %v1314 = vadd.s32 %v1304, %v1308
    %v1315 = vadd.s32 %v1307, %v1313
    %vm1316 = vc.u32 %v1314, %v1310
    %v1317 = vsel %vm1316, 1, 0
    %v1318 = vadd.s32 %v1314, %v1310
    %v1319 = vadd.s32 %v1315, %v1317
    %v1320 = vadd.s32 %v1319, %v1309
    %v1321 = vadd.s32 %v1320, %v1311
    %v1322 = vmul.u32 %v1277, %v1268
    %v1323 = vadd.s32 %v1299, %v1318
    %vm1324 = vc.u32 %v1299, %v1318
    %v1325 = vadd.s32 %v1321, 1
    %v1326 = vsel %vm1324, %v1325, %v1321
    %v1327 = vadd.s32 %v1322, %v1326
    %v1328 = vadd.s32 %v1327, 536870912
    %v1329 = vshrl.u32 %v1328, 30
    %v1330 = vshll.u32 %v1329, 30
    %v1331 = vsub.s32 %v1327, %v1330
    %vm1332 = vcmp.lt.s32.totalorder %v1331, 0
    %v1333 = vsub.s32 0, %v1331
    %v1334 = vsel %vm1332, %v1333, %v1331
    %v1335 = vclz %v1334
    %v1336 = vsub.s32 %v1335, 2
    %vm1337 = vcmp.gt.s32.totalorder 0, %v1336
    %v1338 = vsel %vm1337, 0, %v1336
    %v1339 = vsub.s32 32, %v1338
    %v1340 = vshll.u32 %v1331, %v1338
    %v1341 = vshrl.u32 %v1323, %v1339
    %v1342 = vor.u32 %v1340, %v1341
    %v1343 = vsub.s32 4294967266, %v1338
    %v1344 = vadd.s32 %v1343, 127
    %v1345 = vshll.u32 %v1344, 23
    %v1346 = vor.u32 4788187, %v1345
    %v1347 = vand.u32 2147483647, %v1346
    %v1349 = vcvt.s32.f32 %v1342
    %v1350 = vmul.f32 %v1349, %v1347
    %v1351 = vxor.u32 %v1350, 2147483648
    %v1352 = vsel %vm1231, %v1351, %v1350
    %v1353 = vsub.s32 4, %v1329
    %v1354 = vsel %vm1231, %v1353, %v1329
    %v1355 = vsel %vm1230, %v125, %v1352
    %v1356 = vsel %vm1230, 0, %v1354
    %v1357 = vmul.f32 %v1355, %v1355
    %v1358 = vmul.f32 %v1357, -0.001358992
    %v1359 = vadd.f32 %v1358, 0.041655596
    %v1360 = vmul.f32 %v1357, %v1359
    %v1361 = vadd.f32 %v1360, -0.4999988
    %v1362 = vmul.f32 %v1357, %v1361
    %v1363 = vadd.f32 1.0, %v1362
    %v1364 = vmul.f32 %v1355, %v1355
    %v1365 = vmul.f32 %v1364, -0.00019511016
    %v1366 = vadd.f32 %v1365, 0.008332121
    %v1367 = vmul.f32 %v1364, %v1366
    %v1368 = vadd.f32 %v1367, -0.16666654
    %v1369 = vmul.f32 %v1364, %v1368
    %v1370 = vadd.f32 %v1369, 1.0
    %v1371 = vmul.f32 %v1370, %v1355
    %vm1372 = vweird.f32 %v125
    %v1373 = vand.u32 %v1356, 3
    %vm1374 = vcmp.lt.s32.totalorder %v1373, 2
    %vm1375 = vcmp.eq.s32.totalorder %v1373, 0
    %v1376 = vxor.u32 %v1371, 2147483648
    %v1377 = vsel %vm1375, %v1363, %v1376
    %vm1378 = vcmp.eq.s32.totalorder %v1373, 2
    %v1379 = vxor.u32 %v1363, 2147483648
    %v1380 = vsel %vm1378, %v1379, %v1371
    %v1381 = vsel %vm1374, %v1377, %v1380
    %v1382 = vsel %vm1372, nan, %v1381
    %v1383 = vand.u32 2147483647, %v128
    %vm1384 = vcmp.le.f32.partialorder %v1383, 0.7853982
    %vm1385 = vcmp.lt.s32.totalorder %v128, 0
    %v1386 = vand.u32 %v128, 2139095040
    %v1387 = vshrl.u32 %v1386, 23
    %v1388 = vsub.s32 %v1387, 127
    %v1389 = vand.u32 2147483647, %v128
    %v1390 = vand.u32 %v1389, 8388607
    %v1391 = vor.u32 %v1390, 8388608
    %v1392 = vsub.s32 0, %v1391
    %v1393 = vadd.s32 %v1388, 1
    %vm1394 = vcmp.gt.s32.totalorder %v1393, 0
    %v1395 = vsel %vm1394, %v1393, 0
    %v1396 = vshrl.u32 %v1395, 5
    %v1397 = vand.u32 %v1395, 31
    %v1398 = vsub.s32 32, %v1397
    %v1399 = vshrl.u32 683565275, %v1398
    %v1400 = vshll.u32 683565275, %v1397
    %v1401 = vshrl.u32 2475754826, %v1398
    %v1402 = vor.u32 %v1400, %v1401
    %v1403 = vshll.u32 2475754826, %v1397
    %v1404 = vshrl.u32 2131351028, %v1398
    %v1405 = vor.u32 %v1403, %v1404
    %v1406 = vshll.u32 2131351028, %v1397
    %v1407 = vshrl.u32 2102212464, %v1398
    %v1408 = vor.u32 %v1406, %v1407
    %v1409 = vshll.u32 2102212464, %v1397
    %v1410 = vshrl.u32 920167782, %v1398
    %v1411 = vor.u32 %v1409, %v1410
    %v1412 = vshll.u32 920167782, %v1397
    %v1413 = vshrl.u32 1326507024, %v1398
    %v1414 = vor.u32 %v1412, %v1413
    %vm1415 = vcmp.lt.s32.totalorder %v1396, 1
    %vm1416 = vcmp.lt.s32.totalorder %v1396, 2
    %vm1417 = vcmp.lt.s32.totalorder %v1396, 3
    %vm1418 = vcmp.lt.s32.totalorder %v1396, 4
    %v1419 = vsel %vm1415, %v1399, %v1402
    %v1420 = vsel %vm1418, %v1408, 2102212464
    %v1421 = vsel %vm1417, %v1405, %v1420
    %v1422 = vsel %vm1416, %v1419, %v1421
    %v1423 = vsel %vm1415, %v1402, %v1405
    %v1424 = vsel %vm1418, %v1411, 920167782
    %v1425 = vsel %vm1417, %v1408, %v1424
    %v1426 = vsel %vm1416, %v1423, %v1425
    %v1427 = vsel %vm1415, %v1405, %v1408
    %v1428 = vsel %vm1418, %v1414, 1326507024
    %v1429 = vsel %vm1417, %v1411, %v1428
    %v1430 = vsel %vm1416, %v1427, %v1429
    %v1431 = vshll.u32 %v1391, 8
    %v1432 = vand.u32 %v1431, 65535
    %v1433 = vshrl.u32 %v1431, 16
    %v1434 = vand.u32 %v1430, 65535
    %v1435 = vshrl.u32 %v1430, 16
    %v1436 = vmul.u32 %v1432, %v1434
    %v1437 = vmul.u32 %v1432, %v1435
    %v1438 = vmul.u32 %v1433, %v1434
    %v1439 = vmul.u32 %v1433, %v1435
    %v1440 = vshll.u32 %v1437, 16
    %v1441 = vshrl.u32 %v1437, 16
    %v1442 = vshll.u32 %v1438, 16
    %v1443 = vshrl.u32 %v1438, 16
    %vm1444 = vc.u32 %v1436, %v1440
    %v1445 = vsel %vm1444, 1, 0
    %v1446 = vadd.s32 %v1436, %v1440
    %v1447 = vadd.s32 %v1439, %v1445
    %vm1448 = vc.u32 %v1446, %v1442
    %v1449 = vsel %vm1448, 1, 0
    %v1450 = vadd.s32 %v1446, %v1442
    %v1451 = vadd.s32 %v1447, %v1449
    %v1452 = vadd.s32 %v1451, %v1441
    %v1453 = vadd.s32 %v1452, %v1443
    %v1454 = vand.u32 %v1431, 65535
    %v1455 = vshrl.u32 %v1431, 16
    %v1456 = vand.u32 %v1426, 65535
    %v1457 = vshrl.u32 %v1426, 16
    %v1458 = vmul.u32 %v1454, %v1456
    %v1459 = vmul.u32 %v1454, %v1457
    %v1460 = vmul.u32 %v1455, %v1456
    %v1461 = vmul.u32 %v1455, %v1457
    %v1462 = vshll.u32 %v1459, 16
    %v1463 = vshrl.u32 %v1459, 16
    %v1464 = vshll.u32 %v1460, 16
    %v1465 = vshrl.u32 %v1460, 16
    %vm1466 = vc.u32 %v1458, %v1462
    %v1467 = vsel %vm1466, 1, 0
    %v1468 = vadd.s32 %v1458, %v1462
    %v1469 = vadd.s32 %v1461, %v1467
    %vm1470 = vc.u32 %v1468, %v1464
    %v1471 = vsel %vm1470, 1, 0
    %v1472 = vadd.s32 %v1468, %v1464
    %v1473 = vadd.s32 %v1469, %v1471
    %v1474 = vadd.s32 %v1473, %v1463
    %v1475 = vadd.s32 %v1474, %v1465
    %v1476 = vmul.u32 %v1431, %v1422
    %v1477 = vadd.s32 %v1453, %v1472
    %vm1478 = vc.u32 %v1453, %v1472
    %v1479 = vadd.s32 %v1475, 1
    %v1480 = vsel %vm1478, %v1479, %v1475
    %v1481 = vadd.s32 %v1476, %v1480
    %v1482 = vadd.s32 %v1481, 536870912
    %v1483 = vshrl.u32 %v1482, 30
    %v1484 = vshll.u32 %v1483, 30
    %v1485 = vsub.s32 %v1481, %v1484
    %vm1486 = vcmp.lt.s32.totalorder %v1485, 0
    %v1487 = vsub.s32 0, %v1485
    %v1488 = vsel %vm1486, %v1487, %v1485
    %v1489 = vclz %v1488
    %v1490 = vsub.s32 %v1489, 2
    %vm1491 = vcmp.gt.s32.totalorder 0, %v1490
    %v1492 = vsel %vm1491, 0, %v1490
    %v1493 = vsub.s32 32, %v1492
    %v1494 = vshll.u32 %v1485, %v1492
    %v1495 = vshrl.u32 %v1477, %v1493
    %v1496 = vor.u32 %v1494, %v1495
    %v1497 = vsub.s32 4294967266, %v1492
    %v1498 = vadd.s32 %v1497, 127
    %v1499 = vshll.u32 %v1498, 23
    %v1500 = vor.u32 4788187, %v1499
    %v1501 = vand.u32 2147483647, %v1500
    %v1503 = vcvt.s32.f32 %v1496
    %v1504 = vmul.f32 %v1503, %v1501
    %v1505 = vxor.u32 %v1504, 2147483648
    %v1506 = vsel %vm1385, %v1505, %v1504
    %v1507 = vsub.s32 4, %v1483
    %v1508 = vsel %vm1385, %v1507, %v1483
    %v1509 = vsel %vm1384, %v128, %v1506
    %v1510 = vsel %vm1384, 0, %v1508
    %v1511 = vmul.f32 %v1509, %v1509
    %v1512 = vmul.f32 %v1511, -0.001358992
    %v1513 = vadd.f32 %v1512, 0.041655596
    %v1514 = vmul.f32 %v1511, %v1513
    %v1515 = vadd.f32 %v1514, -0.4999988
    %v1516 = vmul.f32 %v1511, %v1515
    %v1517 = vadd.f32 1.0, %v1516
    %v1518 = vmul.f32 %v1509, %v1509
    %v1519 = vmul.f32 %v1518, -0.00019511016
    %v1520 = vadd.f32 %v1519, 0.008332121
    %v1521 = vmul.f32 %v1518, %v1520
    %v1522 = vadd.f32 %v1521, -0.16666654
    %v1523 = vmul.f32 %v1518, %v1522
    %v1524 = vadd.f32 %v1523, 1.0
    %v1525 = vmul.f32 %v1524, %v1509
    %vm1526 = vweird.f32 %v128
    %v1527 = vand.u32 %v1510, 3
    %vm1528 = vcmp.lt.s32.totalorder %v1527, 2
    %vm1529 = vcmp.eq.s32.totalorder %v1527, 0
    %v1530 = vxor.u32 %v1525, 2147483648
    %v1531 = vsel %vm1529, %v1517, %v1530
    %vm1532 = vcmp.eq.s32.totalorder %v1527, 2
    %v1533 = vxor.u32 %v1517, 2147483648
    %v1534 = vsel %vm1532, %v1533, %v1525
    %v1535 = vsel %vm1528, %v1531, %v1534
    %v1536 = vsel %vm1526, nan, %v1535
    %v1537 = vand.u32 2147483647, %v131
    %vm1538 = vcmp.le.f32.partialorder %v1537, 0.7853982
    %vm1539 = vcmp.lt.s32.totalorder %v131, 0
    %v1540 = vand.u32 %v131, 2139095040
    %v1541 = vshrl.u32 %v1540, 23
    %v1542 = vsub.s32 %v1541, 127
    %v1543 = vand.u32 2147483647, %v131
    %v1544 = vand.u32 %v1543, 8388607
    %v1545 = vor.u32 %v1544, 8388608
    %v1546 = vsub.s32 0, %v1545
    %v1547 = vadd.s32 %v1542, 1
    %vm1548 = vcmp.gt.s32.totalorder %v1547, 0
    %v1549 = vsel %vm1548, %v1547, 0
    %v1550 = vshrl.u32 %v1549, 5
    %v1551 = vand.u32 %v1549, 31
    %v1552 = vsub.s32 32, %v1551
    %v1553 = vshrl.u32 683565275, %v1552
    %v1554 = vshll.u32 683565275, %v1551
    %v1555 = vshrl.u32 2475754826, %v1552
    %v1556 = vor.u32 %v1554, %v1555
    %v1557 = vshll.u32 2475754826, %v1551
    %v1558 = vshrl.u32 2131351028, %v1552
    %v1559 = vor.u32 %v1557, %v1558
    %v1560 = vshll.u32 2131351028, %v1551
    %v1561 = vshrl.u32 2102212464, %v1552
    %v1562 = vor.u32 %v1560, %v1561
    %v1563 = vshll.u32 2102212464, %v1551
    %v1564 = vshrl.u32 920167782, %v1552
    %v1565 = vor.u32 %v1563, %v1564
    %v1566 = vshll.u32 920167782, %v1551
    %v1567 = vshrl.u32 1326507024, %v1552
    %v1568 = vor.u32 %v1566, %v1567
    %vm1569 = vcmp.lt.s32.totalorder %v1550, 1
    %vm1570 = vcmp.lt.s32.totalorder %v1550, 2
    %vm1571 = vcmp.lt.s32.totalorder %v1550, 3
    %vm1572 = vcmp.lt.s32.totalorder %v1550, 4
    %v1573 = vsel %vm1569, %v1553, %v1556
    %v1574 = vsel %vm1572, %v1562, 2102212464
    %v1575 = vsel %vm1571, %v1559, %v1574
    %v1576 = vsel %vm1570, %v1573, %v1575
    %v1577 = vsel %vm1569, %v1556, %v1559
    %v1578 = vsel %vm1572, %v1565, 920167782
    %v1579 = vsel %vm1571, %v1562, %v1578
    %v1580 = vsel %vm1570, %v1577, %v1579
    %v1581 = vsel %vm1569, %v1559, %v1562
    %v1582 = vsel %vm1572, %v1568, 1326507024
    %v1583 = vsel %vm1571, %v1565, %v1582
    %v1584 = vsel %vm1570, %v1581, %v1583
    %v1585 = vshll.u32 %v1545, 8
    %v1586 = vand.u32 %v1585, 65535
    %v1587 = vshrl.u32 %v1585, 16
    %v1588 = vand.u32 %v1584, 65535
    %v1589 = vshrl.u32 %v1584, 16
    %v1590 = vmul.u32 %v1586, %v1588
    %v1591 = vmul.u32 %v1586, %v1589
    %v1592 = vmul.u32 %v1587, %v1588
    %v1593 = vmul.u32 %v1587, %v1589
    %v1594 = vshll.u32 %v1591, 16
    %v1595 = vshrl.u32 %v1591, 16
    %v1596 = vshll.u32 %v1592, 16
    %v1597 = vshrl.u32 %v1592, 16
    %vm1598 = vc.u32 %v1590, %v1594
    %v1599 = vsel %vm1598, 1, 0
    %v1600 = vadd.s32 %v1590, %v1594
    %v1601 = vadd.s32 %v1593, %v1599
    %vm1602 = vc.u32 %v1600, %v1596
    %v1603 = vsel %vm1602, 1, 0
    %v1604 = vadd.s32 %v1600, %v1596
    %v1605 = vadd.s32 %v1601, %v1603
    %v1606 = vadd.s32 %v1605, %v1595
    %v1607 = vadd.s32 %v1606, %v1597
    %v1608 = vand.u32 %v1585, 65535
    %v1609 = vshrl.u32 %v1585, 16
    %v1610 = vand.u32 %v1580, 65535
    %v1611 = vshrl.u32 %v1580, 16
    %v1612 = vmul.u32 %v1608, %v1610
    %v1613 = vmul.u32 %v1608, %v1611
    %v1614 = vmul.u32 %v1609, %v1610
    %v1615 = vmul.u32 %v1609, %v1611
    %v1616 = vshll.u32 %v1613, 16
    %v1617 = vshrl.u32 %v1613, 16
    %v1618 = vshll.u32 %v1614, 16
    %v1619 = vshrl.u32 %v1614, 16
    %vm1620 = vc.u32 %v1612, %v1616
    %v1621 = vsel %vm1620, 1, 0
    %v1622 = vadd.s32 %v1612, %v1616
    %v1623 = vadd.s32 %v1615, %v1621
    %vm1624 = vc.u32 %v1622, %v1618
    %v1625 = vsel %vm1624, 1, 0
    %v1626 = vadd.s32 %v1622, %v1618
    %v1627 = vadd.s32 %v1623, %v1625
    %v1628 = vadd.s32 %v1627, %v1617
    %v1629 = vadd.s32 %v1628, %v1619
    %v1630 = vmul.u32 %v1585, %v1576
    %v1631 = vadd.s32 %v1607, %v1626
    %vm1632 = vc.u32 %v1607, %v1626
    %v1633 = vadd.s32 %v1629, 1
    %v1634 = vsel %vm1632, %v1633, %v1629
    %v1635 = vadd.s32 %v1630, %v1634
    %v1636 = vadd.s32 %v1635, 536870912
    %v1637 = vshrl.u32 %v1636, 30
    %v1638 = vshll.u32 %v1637, 30
    %v1639 = vsub.s32 %v1635, %v1638
    %vm1640 = vcmp.lt.s32.totalorder %v1639, 0
    %v1641 = vsub.s32 0, %v1639
    %v1642 = vsel %vm1640, %v1641, %v1639
    %v1643 = vclz %v1642
    %v1644 = vsub.s32 %v1643, 2
    %vm1645 = vcmp.gt.s32.totalorder 0, %v1644
    %v1646 = vsel %vm1645, 0, %v1644
    %v1647 = vsub.s32 32, %v1646
    %v1648 = vshll.u32 %v1639, %v1646
    %v1649 = vshrl.u32 %v1631, %v1647
    %v1650 = vor.u32 %v1648, %v1649
    %v1651 = vsub.s32 4294967266, %v1646
    %v1652 = vadd.s32 %v1651, 127
    %v1653 = vshll.u32 %v1652, 23
    %v1654 = vor.u32 4788187, %v1653
    %v1655 = vand.u32 2147483647, %v1654
    %v1657 = vcvt.s32.f32 %v1650
    %v1658 = vmul.f32 %v1657, %v1655
    %v1659 = vxor.u32 %v1658, 2147483648
    %v1660 = vsel %vm1539, %v1659, %v1658
    %v1661 = vsub.s32 4, %v1637
    %v1662 = vsel %vm1539, %v1661, %v1637
    %v1663 = vsel %vm1538, %v131, %v1660
    %v1664 = vsel %vm1538, 0, %v1662
    %v1665 = vmul.f32 %v1663, %v1663
    %v1666 = vmul.f32 %v1665, -0.001358992
    %v1667 = vadd.f32 %v1666, 0.041655596
    %v1668 = vmul.f32 %v1665, %v1667
    %v1669 = vadd.f32 %v1668, -0.4999988
    %v1670 = vmul.f32 %v1665, %v1669
    %v1671 = vadd.f32 1.0, %v1670
    %v1672 = vmul.f32 %v1663, %v1663
    %v1673 = vmul.f32 %v1672, -0.00019511016
    %v1674 = vadd.f32 %v1673, 0.008332121
    %v1675 = vmul.f32 %v1672, %v1674
    %v1676 = vadd.f32 %v1675, -0.16666654
    %v1677 = vmul.f32 %v1672, %v1676
    %v1678 = vadd.f32 %v1677, 1.0
    %v1679 = vmul.f32 %v1678, %v1663
    %vm1680 = vweird.f32 %v131
    %v1681 = vand.u32 %v1664, 3
    %vm1682 = vcmp.lt.s32.totalorder %v1681, 2
    %vm1683 = vcmp.eq.s32.totalorder %v1681, 0
    %v1684 = vxor.u32 %v1679, 2147483648
    %v1685 = vsel %vm1683, %v1671, %v1684
    %vm1686 = vcmp.eq.s32.totalorder %v1681, 2
    %v1687 = vxor.u32 %v1671, 2147483648
    %v1688 = vsel %vm1686, %v1687, %v1679
    %v1689 = vsel %vm1682, %v1685, %v1688
    %v1690 = vsel %vm1680, nan, %v1689
    %v1691 = vand.u32 2147483647, %v134
    %vm1692 = vcmp.le.f32.partialorder %v1691, 0.7853982
    %vm1693 = vcmp.lt.s32.totalorder %v134, 0
    %v1694 = vand.u32 %v134, 2139095040
    %v1695 = vshrl.u32 %v1694, 23
    %v1696 = vsub.s32 %v1695, 127
    %v1697 = vand.u32 2147483647, %v134
    %v1698 = vand.u32 %v1697, 8388607
    %v1699 = vor.u32 %v1698, 8388608
    %v1700 = vsub.s32 0, %v1699
    %v1701 = vadd.s32 %v1696, 1
    %vm1702 = vcmp.gt.s32.totalorder %v1701, 0
    %v1703 = vsel %vm1702, %v1701, 0
    %v1704 = vshrl.u32 %v1703, 5
    %v1705 = vand.u32 %v1703, 31
    %v1706 = vsub.s32 32, %v1705
    %v1707 = vshrl.u32 683565275, %v1706
    %v1708 = vshll.u32 683565275, %v1705
    %v1709 = vshrl.u32 2475754826, %v1706
    %v1710 = vor.u32 %v1708, %v1709
    %v1711 = vshll.u32 2475754826, %v1705
    %v1712 = vshrl.u32 2131351028, %v1706
    %v1713 = vor.u32 %v1711, %v1712
    %v1714 = vshll.u32 2131351028, %v1705
    %v1715 = vshrl.u32 2102212464, %v1706
    %v1716 = vor.u32 %v1714, %v1715
    %v1717 = vshll.u32 2102212464, %v1705
    %v1718 = vshrl.u32 920167782, %v1706
    %v1719 = vor.u32 %v1717, %v1718
    %v1720 = vshll.u32 920167782, %v1705
    %v1721 = vshrl.u32 1326507024, %v1706
    %v1722 = vor.u32 %v1720, %v1721
    %vm1723 = vcmp.lt.s32.totalorder %v1704, 1
    %vm1724 = vcmp.lt.s32.totalorder %v1704, 2
    %vm1725 = vcmp.lt.s32.totalorder %v1704, 3
    %vm1726 = vcmp.lt.s32.totalorder %v1704, 4
    %v1727 = vsel %vm1723, %v1707, %v1710
    %v1728 = vsel %vm1726, %v1716, 2102212464
    %v1729 = vsel %vm1725, %v1713, %v1728
    %v1730 = vsel %vm1724, %v1727, %v1729
    %v1731 = vsel %vm1723, %v1710, %v1713
    %v1732 = vsel %vm1726, %v1719, 920167782
    %v1733 = vsel %vm1725, %v1716, %v1732
    %v1734 = vsel %vm1724, %v1731, %v1733
    %v1735 = vsel %vm1723, %v1713, %v1716
    %v1736 = vsel %vm1726, %v1722, 1326507024
    %v1737 = vsel %vm1725, %v1719, %v1736
    %v1738 = vsel %vm1724, %v1735, %v1737
    %v1739 = vshll.u32 %v1699, 8
    %v1740 = vand.u32 %v1739, 65535
    %v1741 = vshrl.u32 %v1739, 16
    %v1742 = vand.u32 %v1738, 65535
    %v1743 = vshrl.u32 %v1738, 16
    %v1744 = vmul.u32 %v1740, %v1742
    %v1745 = vmul.u32 %v1740, %v1743
    %v1746 = vmul.u32 %v1741, %v1742
    %v1747 = vmul.u32 %v1741, %v1743
    %v1748 = vshll.u32 %v1745, 16
    %v1749 = vshrl.u32 %v1745, 16
    %v1750 = vshll.u32 %v1746, 16
    %v1751 = vshrl.u32 %v1746, 16
    %vm1752 = vc.u32 %v1744, %v1748
    %v1753 = vsel %vm1752, 1, 0
    %v1754 = vadd.s32 %v1744, %v1748
    %v1755 = vadd.s32 %v1747, %v1753
    %vm1756 = vc.u32 %v1754, %v1750
    %v1757 = vsel %vm1756, 1, 0
    %v1758 = vadd.s32 %v1754, %v1750
    %v1759 = vadd.s32 %v1755, %v1757
    %v1760 = vadd.s32 %v1759, %v1749
    %v1761 = vadd.s32 %v1760, %v1751
    %v1762 = vand.u32 %v1739, 65535
    %v1763 = vshrl.u32 %v1739, 16
    %v1764 = vand.u32 %v1734, 65535
    %v1765 = vshrl.u32 %v1734, 16
    %v1766 = vmul.u32 %v1762, %v1764
    %v1767 = vmul.u32 %v1762, %v1765
    %v1768 = vmul.u32 %v1763, %v1764
    %v1769 = vmul.u32 %v1763, %v1765
    %v1770 = vshll.u32 %v1767, 16
    %v1771 = vshrl.u32 %v1767, 16
    %v1772 = vshll.u32 %v1768, 16
    %v1773 = vshrl.u32 %v1768, 16
    %vm1774 = vc.u32 %v1766, %v1770
    %v1775 = vsel %vm1774, 1, 0
    %v1776 = vadd.s32 %v1766, %v1770
    %v1777 = vadd.s32 %v1769, %v1775
    %vm1778 = vc.u32 %v1776, %v1772
    %v1779 = vsel %vm1778, 1, 0
    %v1780 = vadd.s32 %v1776, %v1772
    %v1781 = vadd.s32 %v1777, %v1779
    %v1782 = vadd.s32 %v1781, %v1771
    %v1783 = vadd.s32 %v1782, %v1773
    %v1784 = vmul.u32 %v1739, %v1730
    %v1785 = vadd.s32 %v1761, %v1780
    %vm1786 = vc.u32 %v1761, %v1780
    %v1787 = vadd.s32 %v1783, 1
    %v1788 = vsel %vm1786, %v1787, %v1783
    %v1789 = vadd.s32 %v1784, %v1788
    %v1790 = vadd.s32 %v1789, 536870912
    %v1791 = vshrl.u32 %v1790, 30
    %v1792 = vshll.u32 %v1791, 30
    %v1793 = vsub.s32 %v1789, %v1792
    %vm1794 = vcmp.lt.s32.totalorder %v1793, 0
    %v1795 = vsub.s32 0, %v1793
    %v1796 = vsel %vm1794, %v1795, %v1793
    %v1797 = vclz %v1796
    %v1798 = vsub.s32 %v1797, 2
    %vm1799 = vcmp.gt.s32.totalorder 0, %v1798
    %v1800 = vsel %vm1799, 0, %v1798
    %v1801 = vsub.s32 32, %v1800
    %v1802 = vshll.u32 %v1793, %v1800
    %v1803 = vshrl.u32 %v1785, %v1801
    %v1804 = vor.u32 %v1802, %v1803
    %v1805 = vsub.s32 4294967266, %v1800
    %v1806 = vadd.s32 %v1805, 127
    %v1807 = vshll.u32 %v1806, 23
    %v1808 = vor.u32 4788187, %v1807
    %v1809 = vand.u32 2147483647, %v1808
    %v1811 = vcvt.s32.f32 %v1804
    %v1812 = vmul.f32 %v1811, %v1809
    %v1813 = vxor.u32 %v1812, 2147483648
    %v1814 = vsel %vm1693, %v1813, %v1812
    %v1815 = vsub.s32 4, %v1791
    %v1816 = vsel %vm1693, %v1815, %v1791
    %v1817 = vsel %vm1692, %v134, %v1814
    %v1818 = vsel %vm1692, 0, %v1816
    %v1819 = vmul.f32 %v1817, %v1817
    %v1820 = vmul.f32 %v1819, -0.001358992
    %v1821 = vadd.f32 %v1820, 0.041655596
    %v1822 = vmul.f32 %v1819, %v1821
    %v1823 = vadd.f32 %v1822, -0.4999988
    %v1824 = vmul.f32 %v1819, %v1823
    %v1825 = vadd.f32 1.0, %v1824
    %v1826 = vmul.f32 %v1817, %v1817
    %v1827 = vmul.f32 %v1826, -0.00019511016
    %v1828 = vadd.f32 %v1827, 0.008332121
    %v1829 = vmul.f32 %v1826, %v1828
    %v1830 = vadd.f32 %v1829, -0.16666654
    %v1831 = vmul.f32 %v1826, %v1830
    %v1832 = vadd.f32 %v1831, 1.0
    %v1833 = vmul.f32 %v1832, %v1817
    %vm1834 = vweird.f32 %v134
    %v1835 = vand.u32 %v1818, 3
    %vm1836 = vcmp.lt.s32.totalorder %v1835, 2
    %vm1837 = vcmp.eq.s32.totalorder %v1835, 0
    %v1838 = vxor.u32 %v1833, 2147483648
    %v1839 = vsel %vm1837, %v1825, %v1838
    %vm1840 = vcmp.eq.s32.totalorder %v1835, 2
    %v1841 = vxor.u32 %v1825, 2147483648
    %v1842 = vsel %vm1840, %v1841, %v1833
    %v1843 = vsel %vm1836, %v1839, %v1842
    %v1844 = vsel %vm1834, nan, %v1843
    %v1845 = vand.u32 2147483647, %v137
    %vm1846 = vcmp.le.f32.partialorder %v1845, 0.7853982
    %vm1847 = vcmp.lt.s32.totalorder %v137, 0
    %v1848 = vand.u32 %v137, 2139095040
    %v1849 = vshrl.u32 %v1848, 23
    %v1850 = vsub.s32 %v1849, 127
    %v1851 = vand.u32 2147483647, %v137
    %v1852 = vand.u32 %v1851, 8388607
    %v1853 = vor.u32 %v1852, 8388608
    %v1854 = vsub.s32 0, %v1853
    %v1855 = vadd.s32 %v1850, 1
    %vm1856 = vcmp.gt.s32.totalorder %v1855, 0
    %v1857 = vsel %vm1856, %v1855, 0
    %v1858 = vshrl.u32 %v1857, 5
    %v1859 = vand.u32 %v1857, 31
    %v1860 = vsub.s32 32, %v1859
    %v1861 = vshrl.u32 683565275, %v1860
    %v1862 = vshll.u32 683565275, %v1859
    %v1863 = vshrl.u32 2475754826, %v1860
    %v1864 = vor.u32 %v1862, %v1863
    %v1865 = vshll.u32 2475754826, %v1859
    %v1866 = vshrl.u32 2131351028, %v1860
    %v1867 = vor.u32 %v1865, %v1866
    %v1868 = vshll.u32 2131351028, %v1859
    %v1869 = vshrl.u32 2102212464, %v1860
    %v1870 = vor.u32 %v1868, %v1869
    %v1871 = vshll.u32 2102212464, %v1859
    %v1872 = vshrl.u32 920167782, %v1860
    %v1873 = vor.u32 %v1871, %v1872
    %v1874 = vshll.u32 920167782, %v1859
    %v1875 = vshrl.u32 1326507024, %v1860
    %v1876 = vor.u32 %v1874, %v1875
    %vm1877 = vcmp.lt.s32.totalorder %v1858, 1
    %vm1878 = vcmp.lt.s32.totalorder %v1858, 2
    %vm1879 = vcmp.lt.s32.totalorder %v1858, 3
    %vm1880 = vcmp.lt.s32.totalorder %v1858, 4
    %v1881 = vsel %vm1877, %v1861, %v1864
    %v1882 = vsel %vm1880, %v1870, 2102212464
    %v1883 = vsel %vm1879, %v1867, %v1882
    %v1884 = vsel %vm1878, %v1881, %v1883
    %v1885 = vsel %vm1877, %v1864, %v1867
    %v1886 = vsel %vm1880, %v1873, 920167782
    %v1887 = vsel %vm1879, %v1870, %v1886
    %v1888 = vsel %vm1878, %v1885, %v1887
    %v1889 = vsel %vm1877, %v1867, %v1870
    %v1890 = vsel %vm1880, %v1876, 1326507024
    %v1891 = vsel %vm1879, %v1873, %v1890
    %v1892 = vsel %vm1878, %v1889, %v1891
    %v1893 = vshll.u32 %v1853, 8
    %v1894 = vand.u32 %v1893, 65535
    %v1895 = vshrl.u32 %v1893, 16
    %v1896 = vand.u32 %v1892, 65535
    %v1897 = vshrl.u32 %v1892, 16
    %v1898 = vmul.u32 %v1894, %v1896
    %v1899 = vmul.u32 %v1894, %v1897
    %v1900 = vmul.u32 %v1895, %v1896
    %v1901 = vmul.u32 %v1895, %v1897
    %v1902 = vshll.u32 %v1899, 16
    %v1903 = vshrl.u32 %v1899, 16
    %v1904 = vshll.u32 %v1900, 16
    %v1905 = vshrl.u32 %v1900, 16
    %vm1906 = vc.u32 %v1898, %v1902
    %v1907 = vsel %vm1906, 1, 0
    %v1908 = vadd.s32 %v1898, %v1902
    %v1909 = vadd.s32 %v1901, %v1907
    %vm1910 = vc.u32 %v1908, %v1904
    %v1911 = vsel %vm1910, 1, 0
    %v1912 = vadd.s32 %v1908, %v1904
    %v1913 = vadd.s32 %v1909, %v1911
    %v1914 = vadd.s32 %v1913, %v1903
    %v1915 = vadd.s32 %v1914, %v1905
    %v1916 = vand.u32 %v1893, 65535
    %v1917 = vshrl.u32 %v1893, 16
    %v1918 = vand.u32 %v1888, 65535
    %v1919 = vshrl.u32 %v1888, 16
    %v1920 = vmul.u32 %v1916, %v1918
    %v1921 = vmul.u32 %v1916, %v1919
    %v1922 = vmul.u32 %v1917, %v1918
    %v1923 = vmul.u32 %v1917, %v1919
    %v1924 = vshll.u32 %v1921, 16
    %v1925 = vshrl.u32 %v1921, 16
    %v1926 = vshll.u32 %v1922, 16
    %v1927 = vshrl.u32 %v1922, 16
    %vm1928 = vc.u32 %v1920, %v1924
    %v1929 = vsel %vm1928, 1, 0
    %v1930 = vadd.s32 %v1920, %v1924
    %v1931 = vadd.s32 %v1923, %v1929
    %vm1932 = vc.u32 %v1930, %v1926
    %v1933 = vsel %vm1932, 1, 0
    %v1934 = vadd.s32 %v1930, %v1926
    %v1935 = vadd.s32 %v1931, %v1933
    %v1936 = vadd.s32 %v1935, %v1925
    %v1937 = vadd.s32 %v1936, %v1927
    %v1938 = vmul.u32 %v1893, %v1884
    %v1939 = vadd.s32 %v1915, %v1934
    %vm1940 = vc.u32 %v1915, %v1934
    %v1941 = vadd.s32 %v1937, 1
    %v1942 = vsel %vm1940, %v1941, %v1937
    %v1943 = vadd.s32 %v1938, %v1942
    %v1944 = vadd.s32 %v1943, 536870912
    %v1945 = vshrl.u32 %v1944, 30
    %v1946 = vshll.u32 %v1945, 30
    %v1947 = vsub.s32 %v1943, %v1946
    %vm1948 = vcmp.lt.s32.totalorder %v1947, 0
    %v1949 = vsub.s32 0, %v1947
    %v1950 = vsel %vm1948, %v1949, %v1947
    %v1951 = vclz %v1950
    %v1952 = vsub.s32 %v1951, 2
    %vm1953 = vcmp.gt.s32.totalorder 0, %v1952
    %v1954 = vsel %vm1953, 0, %v1952
    %v1955 = vsub.s32 32, %v1954
    %v1956 = vshll.u32 %v1947, %v1954
    %v1957 = vshrl.u32 %v1939, %v1955
    %v1958 = vor.u32 %v1956, %v1957
    %v1959 = vsub.s32 4294967266, %v1954
    %v1960 = vadd.s32 %v1959, 127
    %v1961 = vshll.u32 %v1960, 23
    %v1962 = vor.u32 4788187, %v1961
    %v1963 = vand.u32 2147483647, %v1962
    %v1965 = vcvt.s32.f32 %v1958
    %v1966 = vmul.f32 %v1965, %v1963
    %v1967 = vxor.u32 %v1966, 2147483648
    %v1968 = vsel %vm1847, %v1967, %v1966
    %v1969 = vsub.s32 4, %v1945
    %v1970 = vsel %vm1847, %v1969, %v1945
    %v1971 = vsel %vm1846, %v137, %v1968
    %v1972 = vsel %vm1846, 0, %v1970
    %v1973 = vmul.f32 %v1971, %v1971
    %v1974 = vmul.f32 %v1973, -0.001358992
    %v1975 = vadd.f32 %v1974, 0.041655596
    %v1976 = vmul.f32 %v1973, %v1975
    %v1977 = vadd.f32 %v1976, -0.4999988
    %v1978 = vmul.f32 %v1973, %v1977
    %v1979 = vadd.f32 1.0, %v1978
    %v1980 = vmul.f32 %v1971, %v1971
    %v1981 = vmul.f32 %v1980, -0.00019511016
    %v1982 = vadd.f32 %v1981, 0.008332121
    %v1983 = vmul.f32 %v1980, %v1982
    %v1984 = vadd.f32 %v1983, -0.16666654
    %v1985 = vmul.f32 %v1980, %v1984
    %v1986 = vadd.f32 %v1985, 1.0
    %v1987 = vmul.f32 %v1986, %v1971
    %vm1988 = vweird.f32 %v137
    %v1989 = vand.u32 %v1972, 3
    %vm1990 = vcmp.lt.s32.totalorder %v1989, 2
    %vm1991 = vcmp.eq.s32.totalorder %v1989, 0
    %v1992 = vxor.u32 %v1987, 2147483648
    %v1993 = vsel %vm1991, %v1979, %v1992
    %vm1994 = vcmp.eq.s32.totalorder %v1989, 2
    %v1995 = vxor.u32 %v1979, 2147483648
    %v1996 = vsel %vm1994, %v1995, %v1987
    %v1997 = vsel %vm1990, %v1993, %v1996
    %v1998 = vsel %vm1988, nan, %v1997
    %v1999 = vand.u32 2147483647, %v140
    %vm2000 = vcmp.le.f32.partialorder %v1999, 0.7853982
    %vm2001 = vcmp.lt.s32.totalorder %v140, 0
    %v2002 = vand.u32 %v140, 2139095040
    %v2003 = vshrl.u32 %v2002, 23
    %v2004 = vsub.s32 %v2003, 127
    %v2005 = vand.u32 2147483647, %v140
    %v2006 = vand.u32 %v2005, 8388607
    %v2007 = vor.u32 %v2006, 8388608
    %v2008 = vsub.s32 0, %v2007
    %v2009 = vadd.s32 %v2004, 1
    %vm2010 = vcmp.gt.s32.totalorder %v2009, 0
    %v2011 = vsel %vm2010, %v2009, 0
    %v2012 = vshrl.u32 %v2011, 5
    %v2013 = vand.u32 %v2011, 31
    %v2014 = vsub.s32 32, %v2013
    %v2015 = vshrl.u32 683565275, %v2014
    %v2016 = vshll.u32 683565275, %v2013
    %v2017 = vshrl.u32 2475754826, %v2014
    %v2018 = vor.u32 %v2016, %v2017
    %v2019 = vshll.u32 2475754826, %v2013
    %v2020 = vshrl.u32 2131351028, %v2014
    %v2021 = vor.u32 %v2019, %v2020
    %v2022 = vshll.u32 2131351028, %v2013
    %v2023 = vshrl.u32 2102212464, %v2014
    %v2024 = vor.u32 %v2022, %v2023
    %v2025 = vshll.u32 2102212464, %v2013
    %v2026 = vshrl.u32 920167782, %v2014
    %v2027 = vor.u32 %v2025, %v2026
    %v2028 = vshll.u32 920167782, %v2013
    %v2029 = vshrl.u32 1326507024, %v2014
    %v2030 = vor.u32 %v2028, %v2029
    %vm2031 = vcmp.lt.s32.totalorder %v2012, 1
    %vm2032 = vcmp.lt.s32.totalorder %v2012, 2
    %vm2033 = vcmp.lt.s32.totalorder %v2012, 3
    %vm2034 = vcmp.lt.s32.totalorder %v2012, 4
    %v2035 = vsel %vm2031, %v2015, %v2018
    %v2036 = vsel %vm2034, %v2024, 2102212464
    %v2037 = vsel %vm2033, %v2021, %v2036
    %v2038 = vsel %vm2032, %v2035, %v2037
    %v2039 = vsel %vm2031, %v2018, %v2021
    %v2040 = vsel %vm2034, %v2027, 920167782
    %v2041 = vsel %vm2033, %v2024, %v2040
    %v2042 = vsel %vm2032, %v2039, %v2041
    %v2043 = vsel %vm2031, %v2021, %v2024
    %v2044 = vsel %vm2034, %v2030, 1326507024
    %v2045 = vsel %vm2033, %v2027, %v2044
    %v2046 = vsel %vm2032, %v2043, %v2045
    %v2047 = vshll.u32 %v2007, 8
    %v2048 = vand.u32 %v2047, 65535
    %v2049 = vshrl.u32 %v2047, 16
    %v2050 = vand.u32 %v2046, 65535
    %v2051 = vshrl.u32 %v2046, 16
    %v2052 = vmul.u32 %v2048, %v2050
    %v2053 = vmul.u32 %v2048, %v2051
    %v2054 = vmul.u32 %v2049, %v2050
    %v2055 = vmul.u32 %v2049, %v2051
    %v2056 = vshll.u32 %v2053, 16
    %v2057 = vshrl.u32 %v2053, 16
    %v2058 = vshll.u32 %v2054, 16
    %v2059 = vshrl.u32 %v2054, 16
    %vm2060 = vc.u32 %v2052, %v2056
    %v2061 = vsel %vm2060, 1, 0
    %v2062 = vadd.s32 %v2052, %v2056
    %v2063 = vadd.s32 %v2055, %v2061
    %vm2064 = vc.u32 %v2062, %v2058
    %v2065 = vsel %vm2064, 1, 0
    %v2066 = vadd.s32 %v2062, %v2058
    %v2067 = vadd.s32 %v2063, %v2065
    %v2068 = vadd.s32 %v2067, %v2057
    %v2069 = vadd.s32 %v2068, %v2059
    %v2070 = vand.u32 %v2047, 65535
    %v2071 = vshrl.u32 %v2047, 16
    %v2072 = vand.u32 %v2042, 65535
    %v2073 = vshrl.u32 %v2042, 16
    %v2074 = vmul.u32 %v2070, %v2072
    %v2075 = vmul.u32 %v2070, %v2073
    %v2076 = vmul.u32 %v2071, %v2072
    %v2077 = vmul.u32 %v2071, %v2073
    %v2078 = vshll.u32 %v2075, 16
    %v2079 = vshrl.u32 %v2075, 16
    %v2080 = vshll.u32 %v2076, 16
    %v2081 = vshrl.u32 %v2076, 16
    %vm2082 = vc.u32 %v2074, %v2078
    %v2083 = vsel %vm2082, 1, 0
    %v2084 = vadd.s32 %v2074, %v2078
    %v2085 = vadd.s32 %v2077, %v2083
    %vm2086 = vc.u32 %v2084, %v2080
    %v2087 = vsel %vm2086, 1, 0
    %v2088 = vadd.s32 %v2084, %v2080
    %v2089 = vadd.s32 %v2085, %v2087
    %v2090 = vadd.s32 %v2089, %v2079
    %v2091 = vadd.s32 %v2090, %v2081
    %v2092 = vmul.u32 %v2047, %v2038
    %v2093 = vadd.s32 %v2069, %v2088
    %vm2094 = vc.u32 %v2069, %v2088
    %v2095 = vadd.s32 %v2091, 1
    %v2096 = vsel %vm2094, %v2095, %v2091
    %v2097 = vadd.s32 %v2092, %v2096
    %v2098 = vadd.s32 %v2097, 536870912
    %v2099 = vshrl.u32 %v2098, 30
    %v2100 = vshll.u32 %v2099, 30
    %v2101 = vsub.s32 %v2097, %v2100
    %vm2102 = vcmp.lt.s32.totalorder %v2101, 0
    %v2103 = vsub.s32 0, %v2101
    %v2104 = vsel %vm2102, %v2103, %v2101
    %v2105 = vclz %v2104
    %v2106 = vsub.s32 %v2105, 2
    %vm2107 = vcmp.gt.s32.totalorder 0, %v2106
    %v2108 = vsel %vm2107, 0, %v2106
    %v2109 = vsub.s32 32, %v2108
    %v2110 = vshll.u32 %v2101, %v2108
    %v2111 = vshrl.u32 %v2093, %v2109
    %v2112 = vor.u32 %v2110, %v2111
    %v2113 = vsub.s32 4294967266, %v2108
    %v2114 = vadd.s32 %v2113, 127
    %v2115 = vshll.u32 %v2114, 23
    %v2116 = vor.u32 4788187, %v2115
    %v2117 = vand.u32 2147483647, %v2116
    %v2119 = vcvt.s32.f32 %v2112
    %v2120 = vmul.f32 %v2119, %v2117
    %v2121 = vxor.u32 %v2120, 2147483648
    %v2122 = vsel %vm2001, %v2121, %v2120
    %v2123 = vsub.s32 4, %v2099
    %v2124 = vsel %vm2001, %v2123, %v2099
    %v2125 = vsel %vm2000, %v140, %v2122
    %v2126 = vsel %vm2000, 0, %v2124
    %v2127 = vmul.f32 %v2125, %v2125
    %v2128 = vmul.f32 %v2127, -0.001358992
    %v2129 = vadd.f32 %v2128, 0.041655596
    %v2130 = vmul.f32 %v2127, %v2129
    %v2131 = vadd.f32 %v2130, -0.4999988
    %v2132 = vmul.f32 %v2127, %v2131
    %v2133 = vadd.f32 1.0, %v2132
    %v2134 = vmul.f32 %v2125, %v2125
    %v2135 = vmul.f32 %v2134, -0.00019511016
    %v2136 = vadd.f32 %v2135, 0.008332121
    %v2137 = vmul.f32 %v2134, %v2136
    %v2138 = vadd.f32 %v2137, -0.16666654
    %v2139 = vmul.f32 %v2134, %v2138
    %v2140 = vadd.f32 %v2139, 1.0
    %v2141 = vmul.f32 %v2140, %v2125
    %vm2142 = vweird.f32 %v140
    %v2143 = vand.u32 %v2126, 3
    %vm2144 = vcmp.lt.s32.totalorder %v2143, 2
    %vm2145 = vcmp.eq.s32.totalorder %v2143, 0
    %v2146 = vxor.u32 %v2141, 2147483648
    %v2147 = vsel %vm2145, %v2133, %v2146
    %vm2148 = vcmp.eq.s32.totalorder %v2143, 2
    %v2149 = vxor.u32 %v2133, 2147483648
    %v2150 = vsel %vm2148, %v2149, %v2141
    %v2151 = vsel %vm2144, %v2147, %v2150
    %v2152 = vsel %vm2142, nan, %v2151
    %v2153 = vand.u32 2147483647, %v143
    %vm2154 = vcmp.le.f32.partialorder %v2153, 0.7853982
    %vm2155 = vcmp.lt.s32.totalorder %v143, 0
    %v2156 = vand.u32 %v143, 2139095040
    %v2157 = vshrl.u32 %v2156, 23
    %v2158 = vsub.s32 %v2157, 127
    %v2159 = vand.u32 2147483647, %v143
    %v2160 = vand.u32 %v2159, 8388607
    %v2161 = vor.u32 %v2160, 8388608
    %v2162 = vsub.s32 0, %v2161
    %v2163 = vadd.s32 %v2158, 1
    %vm2164 = vcmp.gt.s32.totalorder %v2163, 0
    %v2165 = vsel %vm2164, %v2163, 0
    %v2166 = vshrl.u32 %v2165, 5
    %v2167 = vand.u32 %v2165, 31
    %v2168 = vsub.s32 32, %v2167
    %v2169 = vshrl.u32 683565275, %v2168
    %v2170 = vshll.u32 683565275, %v2167
    %v2171 = vshrl.u32 2475754826, %v2168
    %v2172 = vor.u32 %v2170, %v2171
    %v2173 = vshll.u32 2475754826, %v2167
    %v2174 = vshrl.u32 2131351028, %v2168
    %v2175 = vor.u32 %v2173, %v2174
    %v2176 = vshll.u32 2131351028, %v2167
    %v2177 = vshrl.u32 2102212464, %v2168
    %v2178 = vor.u32 %v2176, %v2177
    %v2179 = vshll.u32 2102212464, %v2167
    %v2180 = vshrl.u32 920167782, %v2168
    %v2181 = vor.u32 %v2179, %v2180
    %v2182 = vshll.u32 920167782, %v2167
    %v2183 = vshrl.u32 1326507024, %v2168
    %v2184 = vor.u32 %v2182, %v2183
    %vm2185 = vcmp.lt.s32.totalorder %v2166, 1
    %vm2186 = vcmp.lt.s32.totalorder %v2166, 2
    %vm2187 = vcmp.lt.s32.totalorder %v2166, 3
    %vm2188 = vcmp.lt.s32.totalorder %v2166, 4
    %v2189 = vsel %vm2185, %v2169, %v2172
    %v2190 = vsel %vm2188, %v2178, 2102212464
    %v2191 = vsel %vm2187, %v2175, %v2190
    %v2192 = vsel %vm2186, %v2189, %v2191
    %v2193 = vsel %vm2185, %v2172, %v2175
    %v2194 = vsel %vm2188, %v2181, 920167782
    %v2195 = vsel %vm2187, %v2178, %v2194
    %v2196 = vsel %vm2186, %v2193, %v2195
    %v2197 = vsel %vm2185, %v2175, %v2178
    %v2198 = vsel %vm2188, %v2184, 1326507024
    %v2199 = vsel %vm2187, %v2181, %v2198
    %v2200 = vsel %vm2186, %v2197, %v2199
    %v2201 = vshll.u32 %v2161, 8
    %v2202 = vand.u32 %v2201, 65535
    %v2203 = vshrl.u32 %v2201, 16
    %v2204 = vand.u32 %v2200, 65535
    %v2205 = vshrl.u32 %v2200, 16
    %v2206 = vmul.u32 %v2202, %v2204
    %v2207 = vmul.u32 %v2202, %v2205
    %v2208 = vmul.u32 %v2203, %v2204
    %v2209 = vmul.u32 %v2203, %v2205
    %v2210 = vshll.u32 %v2207, 16
    %v2211 = vshrl.u32 %v2207, 16
    %v2212 = vshll.u32 %v2208, 16
    %v2213 = vshrl.u32 %v2208, 16
    %vm2214 = vc.u32 %v2206, %v2210
    %v2215 = vsel %vm2214, 1, 0
    %v2216 = vadd.s32 %v2206, %v2210
    %v2217 = vadd.s32 %v2209, %v2215
    %vm2218 = vc.u32 %v2216, %v2212
    %v2219 = vsel %vm2218, 1, 0
    %v2220 = vadd.s32 %v2216, %v2212
    %v2221 = vadd.s32 %v2217, %v2219
    %v2222 = vadd.s32 %v2221, %v2211
    %v2223 = vadd.s32 %v2222, %v2213
    %v2224 = vand.u32 %v2201, 65535
    %v2225 = vshrl.u32 %v2201, 16
    %v2226 = vand.u32 %v2196, 65535
    %v2227 = vshrl.u32 %v2196, 16
    %v2228 = vmul.u32 %v2224, %v2226
    %v2229 = vmul.u32 %v2224, %v2227
    %v2230 = vmul.u32 %v2225, %v2226
    %v2231 = vmul.u32 %v2225, %v2227
    %v2232 = vshll.u32 %v2229, 16
    %v2233 = vshrl.u32 %v2229, 16
    %v2234 = vshll.u32 %v2230, 16
    %v2235 = vshrl.u32 %v2230, 16
    %vm2236 = vc.u32 %v2228, %v2232
    %v2237 = vsel %vm2236, 1, 0
    %v2238 = vadd.s32 %v2228, %v2232
    %v2239 = vadd.s32 %v2231, %v2237
    %vm2240 = vc.u32 %v2238, %v2234
    %v2241 = vsel %vm2240, 1, 0
    %v2242 = vadd.s32 %v2238, %v2234
    %v2243 = vadd.s32 %v2239, %v2241
    %v2244 = vadd.s32 %v2243, %v2233
    %v2245 = vadd.s32 %v2244, %v2235
    %v2246 = vmul.u32 %v2201, %v2192
    %v2247 = vadd.s32 %v2223, %v2242
    %vm2248 = vc.u32 %v2223, %v2242
    %v2249 = vadd.s32 %v2245, 1
    %v2250 = vsel %vm2248, %v2249, %v2245
    %v2251 = vadd.s32 %v2246, %v2250
    %v2252 = vadd.s32 %v2251, 536870912
    %v2253 = vshrl.u32 %v2252, 30
    %v2254 = vshll.u32 %v2253, 30
    %v2255 = vsub.s32 %v2251, %v2254
    %vm2256 = vcmp.lt.s32.totalorder %v2255, 0
    %v2257 = vsub.s32 0, %v2255
    %v2258 = vsel %vm2256, %v2257, %v2255
    %v2259 = vclz %v2258
    %v2260 = vsub.s32 %v2259, 2
    %vm2261 = vcmp.gt.s32.totalorder 0, %v2260
    %v2262 = vsel %vm2261, 0, %v2260
    %v2263 = vsub.s32 32, %v2262
    %v2264 = vshll.u32 %v2255, %v2262
    %v2265 = vshrl.u32 %v2247, %v2263
    %v2266 = vor.u32 %v2264, %v2265
    %v2267 = vsub.s32 4294967266, %v2262
    %v2268 = vadd.s32 %v2267, 127
    %v2269 = vshll.u32 %v2268, 23
    %v2270 = vor.u32 4788187, %v2269
    %v2271 = vand.u32 2147483647, %v2270
    %v2273 = vcvt.s32.f32 %v2266
    %v2274 = vmul.f32 %v2273, %v2271
    %v2275 = vxor.u32 %v2274, 2147483648
    %v2276 = vsel %vm2155, %v2275, %v2274
    %v2277 = vsub.s32 4, %v2253
    %v2278 = vsel %vm2155, %v2277, %v2253
    %v2279 = vsel %vm2154, %v143, %v2276
    %v2280 = vsel %vm2154, 0, %v2278
    %v2281 = vmul.f32 %v2279, %v2279
    %v2282 = vmul.f32 %v2281, -0.001358992
    %v2283 = vadd.f32 %v2282, 0.041655596
    %v2284 = vmul.f32 %v2281, %v2283
    %v2285 = vadd.f32 %v2284, -0.4999988
    %v2286 = vmul.f32 %v2281, %v2285
    %v2287 = vadd.f32 1.0, %v2286
    %v2288 = vmul.f32 %v2279, %v2279
    %v2289 = vmul.f32 %v2288, -0.00019511016
    %v2290 = vadd.f32 %v2289, 0.008332121
    %v2291 = vmul.f32 %v2288, %v2290
    %v2292 = vadd.f32 %v2291, -0.16666654
    %v2293 = vmul.f32 %v2288, %v2292
    %v2294 = vadd.f32 %v2293, 1.0
    %v2295 = vmul.f32 %v2294, %v2279
    %vm2296 = vweird.f32 %v143
    %v2297 = vand.u32 %v2280, 3
    %vm2298 = vcmp.lt.s32.totalorder %v2297, 2
    %vm2299 = vcmp.eq.s32.totalorder %v2297, 0
    %v2300 = vxor.u32 %v2295, 2147483648
    %v2301 = vsel %vm2299, %v2287, %v2300
    %vm2302 = vcmp.eq.s32.totalorder %v2297, 2
    %v2303 = vxor.u32 %v2287, 2147483648
    %v2304 = vsel %vm2302, %v2303, %v2295
    %v2305 = vsel %vm2298, %v2301, %v2304
    %v2306 = vsel %vm2296, nan, %v2305
    %v2307 = vand.u32 2147483647, %v146
    %vm2308 = vcmp.le.f32.partialorder %v2307, 0.7853982
    %vm2309 = vcmp.lt.s32.totalorder %v146, 0
    %v2310 = vand.u32 %v146, 2139095040
    %v2311 = vshrl.u32 %v2310, 23
    %v2312 = vsub.s32 %v2311, 127
    %v2313 = vand.u32 2147483647, %v146
    %v2314 = vand.u32 %v2313, 8388607
    %v2315 = vor.u32 %v2314, 8388608
    %v2316 = vsub.s32 0, %v2315
    %v2317 = vadd.s32 %v2312, 1
    %vm2318 = vcmp.gt.s32.totalorder %v2317, 0
    %v2319 = vsel %vm2318, %v2317, 0
    %v2320 = vshrl.u32 %v2319, 5
    %v2321 = vand.u32 %v2319, 31
    %v2322 = vsub.s32 32, %v2321
    %v2323 = vshrl.u32 683565275, %v2322
    %v2324 = vshll.u32 683565275, %v2321
    %v2325 = vshrl.u32 2475754826, %v2322
    %v2326 = vor.u32 %v2324, %v2325
    %v2327 = vshll.u32 2475754826, %v2321
    %v2328 = vshrl.u32 2131351028, %v2322
    %v2329 = vor.u32 %v2327, %v2328
    %v2330 = vshll.u32 2131351028, %v2321
    %v2331 = vshrl.u32 2102212464, %v2322
    %v2332 = vor.u32 %v2330, %v2331
    %v2333 = vshll.u32 2102212464, %v2321
    %v2334 = vshrl.u32 920167782, %v2322
    %v2335 = vor.u32 %v2333, %v2334
    %v2336 = vshll.u32 920167782, %v2321
    %v2337 = vshrl.u32 1326507024, %v2322
    %v2338 = vor.u32 %v2336, %v2337
    %vm2339 = vcmp.lt.s32.totalorder %v2320, 1
    %vm2340 = vcmp.lt.s32.totalorder %v2320, 2
    %vm2341 = vcmp.lt.s32.totalorder %v2320, 3
    %vm2342 = vcmp.lt.s32.totalorder %v2320, 4
    %v2343 = vsel %vm2339, %v2323, %v2326
    %v2344 = vsel %vm2342, %v2332, 2102212464
    %v2345 = vsel %vm2341, %v2329, %v2344
    %v2346 = vsel %vm2340, %v2343, %v2345
    %v2347 = vsel %vm2339, %v2326, %v2329
    %v2348 = vsel %vm2342, %v2335, 920167782
    %v2349 = vsel %vm2341, %v2332, %v2348
    %v2350 = vsel %vm2340, %v2347, %v2349
    %v2351 = vsel %vm2339, %v2329, %v2332
    %v2352 = vsel %vm2342, %v2338, 1326507024
    %v2353 = vsel %vm2341, %v2335, %v2352
    %v2354 = vsel %vm2340, %v2351, %v2353
    %v2355 = vshll.u32 %v2315, 8
    %v2356 = vand.u32 %v2355, 65535
    %v2357 = vshrl.u32 %v2355, 16
    %v2358 = vand.u32 %v2354, 65535
    %v2359 = vshrl.u32 %v2354, 16
    %v2360 = vmul.u32 %v2356, %v2358
    %v2361 = vmul.u32 %v2356, %v2359
    %v2362 = vmul.u32 %v2357, %v2358
    %v2363 = vmul.u32 %v2357, %v2359
    %v2364 = vshll.u32 %v2361, 16
    %v2365 = vshrl.u32 %v2361, 16
    %v2366 = vshll.u32 %v2362, 16
    %v2367 = vshrl.u32 %v2362, 16
    %vm2368 = vc.u32 %v2360, %v2364
    %v2369 = vsel %vm2368, 1, 0
    %v2370 = vadd.s32 %v2360, %v2364
    %v2371 = vadd.s32 %v2363, %v2369
    %vm2372 = vc.u32 %v2370, %v2366
    %v2373 = vsel %vm2372, 1, 0
    %v2374 = vadd.s32 %v2370, %v2366
    %v2375 = vadd.s32 %v2371, %v2373
    %v2376 = vadd.s32 %v2375, %v2365
    %v2377 = vadd.s32 %v2376, %v2367
    %v2378 = vand.u32 %v2355, 65535
    %v2379 = vshrl.u32 %v2355, 16
    %v2380 = vand.u32 %v2350, 65535
    %v2381 = vshrl.u32 %v2350, 16
    %v2382 = vmul.u32 %v2378, %v2380
    %v2383 = vmul.u32 %v2378, %v2381
    %v2384 = vmul.u32 %v2379, %v2380
    %v2385 = vmul.u32 %v2379, %v2381
    %v2386 = vshll.u32 %v2383, 16
    %v2387 = vshrl.u32 %v2383, 16
    %v2388 = vshll.u32 %v2384, 16
    %v2389 = vshrl.u32 %v2384, 16
    %vm2390 = vc.u32 %v2382, %v2386
    %v2391 = vsel %vm2390, 1, 0
    %v2392 = vadd.s32 %v2382, %v2386
    %v2393 = vadd.s32 %v2385, %v2391
    %vm2394 = vc.u32 %v2392, %v2388
    %v2395 = vsel %vm2394, 1, 0
    %v2396 = vadd.s32 %v2392, %v2388
    %v2397 = vadd.s32 %v2393, %v2395
    %v2398 = vadd.s32 %v2397, %v2387
    %v2399 = vadd.s32 %v2398, %v2389
    %v2400 = vmul.u32 %v2355, %v2346
    %v2401 = vadd.s32 %v2377, %v2396
    %vm2402 = vc.u32 %v2377, %v2396
    %v2403 = vadd.s32 %v2399, 1
    %v2404 = vsel %vm2402, %v2403, %v2399
    %v2405 = vadd.s32 %v2400, %v2404
    %v2406 = vadd.s32 %v2405, 536870912
    %v2407 = vshrl.u32 %v2406, 30
    %v2408 = vshll.u32 %v2407, 30
    %v2409 = vsub.s32 %v2405, %v2408
    %vm2410 = vcmp.lt.s32.totalorder %v2409, 0
    %v2411 = vsub.s32 0, %v2409
    %v2412 = vsel %vm2410, %v2411, %v2409
    %v2413 = vclz %v2412
    %v2414 = vsub.s32 %v2413, 2
    %vm2415 = vcmp.gt.s32.totalorder 0, %v2414
    %v2416 = vsel %vm2415, 0, %v2414
    %v2417 = vsub.s32 32, %v2416
    %v2418 = vshll.u32 %v2409, %v2416
    %v2419 = vshrl.u32 %v2401, %v2417
    %v2420 = vor.u32 %v2418, %v2419
    %v2421 = vsub.s32 4294967266, %v2416
    %v2422 = vadd.s32 %v2421, 127
    %v2423 = vshll.u32 %v2422, 23
    %v2424 = vor.u32 4788187, %v2423
    %v2425 = vand.u32 2147483647, %v2424
    %v2427 = vcvt.s32.f32 %v2420
    %v2428 = vmul.f32 %v2427, %v2425
    %v2429 = vxor.u32 %v2428, 2147483648
    %v2430 = vsel %vm2309, %v2429, %v2428
    %v2431 = vsub.s32 4, %v2407
    %v2432 = vsel %vm2309, %v2431, %v2407
    %v2433 = vsel %vm2308, %v146, %v2430
    %v2434 = vsel %vm2308, 0, %v2432
    %v2435 = vmul.f32 %v2433, %v2433
    %v2436 = vmul.f32 %v2435, -0.001358992
    %v2437 = vadd.f32 %v2436, 0.041655596
    %v2438 = vmul.f32 %v2435, %v2437
    %v2439 = vadd.f32 %v2438, -0.4999988
    %v2440 = vmul.f32 %v2435, %v2439
    %v2441 = vadd.f32 1.0, %v2440
    %v2442 = vmul.f32 %v2433, %v2433
    %v2443 = vmul.f32 %v2442, -0.00019511016
    %v2444 = vadd.f32 %v2443, 0.008332121
    %v2445 = vmul.f32 %v2442, %v2444
    %v2446 = vadd.f32 %v2445, -0.16666654
    %v2447 = vmul.f32 %v2442, %v2446
    %v2448 = vadd.f32 %v2447, 1.0
    %v2449 = vmul.f32 %v2448, %v2433
    %vm2450 = vweird.f32 %v146
    %v2451 = vand.u32 %v2434, 3
    %vm2452 = vcmp.lt.s32.totalorder %v2451, 2
    %vm2453 = vcmp.eq.s32.totalorder %v2451, 0
    %v2454 = vxor.u32 %v2449, 2147483648
    %v2455 = vsel %vm2453, %v2441, %v2454
    %vm2456 = vcmp.eq.s32.totalorder %v2451, 2
    %v2457 = vxor.u32 %v2441, 2147483648
    %v2458 = vsel %vm2456, %v2457, %v2449
    %v2459 = vsel %vm2452, %v2455, %v2458
    %v2460 = vsel %vm2450, nan, %v2459
    %v2461 = vand.u32 2147483647, %v149
    %vm2462 = vcmp.le.f32.partialorder %v2461, 0.7853982
    %vm2463 = vcmp.lt.s32.totalorder %v149, 0
    %v2464 = vand.u32 %v149, 2139095040
    %v2465 = vshrl.u32 %v2464, 23
    %v2466 = vsub.s32 %v2465, 127
    %v2467 = vand.u32 2147483647, %v149
    %v2468 = vand.u32 %v2467, 8388607
    %v2469 = vor.u32 %v2468, 8388608
    %v2470 = vsub.s32 0, %v2469
    %v2471 = vadd.s32 %v2466, 1
    %vm2472 = vcmp.gt.s32.totalorder %v2471, 0
    %v2473 = vsel %vm2472, %v2471, 0
    %v2474 = vshrl.u32 %v2473, 5
    %v2475 = vand.u32 %v2473, 31
    %v2476 = vsub.s32 32, %v2475
    %v2477 = vshrl.u32 683565275, %v2476
    %v2478 = vshll.u32 683565275, %v2475
    %v2479 = vshrl.u32 2475754826, %v2476
    %v2480 = vor.u32 %v2478, %v2479
    %v2481 = vshll.u32 2475754826, %v2475
    %v2482 = vshrl.u32 2131351028, %v2476
    %v2483 = vor.u32 %v2481, %v2482
    %v2484 = vshll.u32 2131351028, %v2475
    %v2485 = vshrl.u32 2102212464, %v2476
    %v2486 = vor.u32 %v2484, %v2485
    %v2487 = vshll.u32 2102212464, %v2475
    %v2488 = vshrl.u32 920167782, %v2476
    %v2489 = vor.u32 %v2487, %v2488
    %v2490 = vshll.u32 920167782, %v2475
    %v2491 = vshrl.u32 1326507024, %v2476
    %v2492 = vor.u32 %v2490, %v2491
    %vm2493 = vcmp.lt.s32.totalorder %v2474, 1
    %vm2494 = vcmp.lt.s32.totalorder %v2474, 2
    %vm2495 = vcmp.lt.s32.totalorder %v2474, 3
    %vm2496 = vcmp.lt.s32.totalorder %v2474, 4
    %v2497 = vsel %vm2493, %v2477, %v2480
    %v2498 = vsel %vm2496, %v2486, 2102212464
    %v2499 = vsel %vm2495, %v2483, %v2498
    %v2500 = vsel %vm2494, %v2497, %v2499
    %v2501 = vsel %vm2493, %v2480, %v2483
    %v2502 = vsel %vm2496, %v2489, 920167782
    %v2503 = vsel %vm2495, %v2486, %v2502
    %v2504 = vsel %vm2494, %v2501, %v2503
    %v2505 = vsel %vm2493, %v2483, %v2486
    %v2506 = vsel %vm2496, %v2492, 1326507024
    %v2507 = vsel %vm2495, %v2489, %v2506
    %v2508 = vsel %vm2494, %v2505, %v2507
    %v2509 = vshll.u32 %v2469, 8
    %v2510 = vand.u32 %v2509, 65535
    %v2511 = vshrl.u32 %v2509, 16
    %v2512 = vand.u32 %v2508, 65535
    %v2513 = vshrl.u32 %v2508, 16
    %v2514 = vmul.u32 %v2510, %v2512
    %v2515 = vmul.u32 %v2510, %v2513
    %v2516 = vmul.u32 %v2511, %v2512
    %v2517 = vmul.u32 %v2511, %v2513
    %v2518 = vshll.u32 %v2515, 16
    %v2519 = vshrl.u32 %v2515, 16
    %v2520 = vshll.u32 %v2516, 16
    %v2521 = vshrl.u32 %v2516, 16
    %vm2522 = vc.u32 %v2514, %v2518
    %v2523 = vsel %vm2522, 1, 0
    %v2524 = vadd.s32 %v2514, %v2518
    %v2525 = vadd.s32 %v2517, %v2523
    %vm2526 = vc.u32 %v2524, %v2520
    %v2527 = vsel %vm2526, 1, 0
    %v2528 = vadd.s32 %v2524, %v2520
    %v2529 = vadd.s32 %v2525, %v2527
    %v2530 = vadd.s32 %v2529, %v2519
    %v2531 = vadd.s32 %v2530, %v2521
    %v2532 = vand.u32 %v2509, 65535
    %v2533 = vshrl.u32 %v2509, 16
    %v2534 = vand.u32 %v2504, 65535
    %v2535 = vshrl.u32 %v2504, 16
    %v2536 = vmul.u32 %v2532, %v2534
    %v2537 = vmul.u32 %v2532, %v2535
    %v2538 = vmul.u32 %v2533, %v2534
    %v2539 = vmul.u32 %v2533, %v2535
    %v2540 = vshll.u32 %v2537, 16
    %v2541 = vshrl.u32 %v2537, 16
    %v2542 = vshll.u32 %v2538, 16
    %v2543 = vshrl.u32 %v2538, 16
    %vm2544 = vc.u32 %v2536, %v2540
    %v2545 = vsel %vm2544, 1, 0
    %v2546 = vadd.s32 %v2536, %v2540
    %v2547 = vadd.s32 %v2539, %v2545
    %vm2548 = vc.u32 %v2546, %v2542
    %v2549 = vsel %vm2548, 1, 0
    %v2550 = vadd.s32 %v2546, %v2542
    %v2551 = vadd.s32 %v2547, %v2549
    %v2552 = vadd.s32 %v2551, %v2541
    %v2553 = vadd.s32 %v2552, %v2543
    %v2554 = vmul.u32 %v2509, %v2500
    %v2555 = vadd.s32 %v2531, %v2550
    %vm2556 = vc.u32 %v2531, %v2550
    %v2557 = vadd.s32 %v2553, 1
    %v2558 = vsel %vm2556, %v2557, %v2553
    %v2559 = vadd.s32 %v2554, %v2558
    %v2560 = vadd.s32 %v2559, 536870912
    %v2561 = vshrl.u32 %v2560, 30
    %v2562 = vshll.u32 %v2561, 30
    %v2563 = vsub.s32 %v2559, %v2562
    %vm2564 = vcmp.lt.s32.totalorder %v2563, 0
    %v2565 = vsub.s32 0, %v2563
    %v2566 = vsel %vm2564, %v2565, %v2563
    %v2567 = vclz %v2566
    %v2568 = vsub.s32 %v2567, 2
    %vm2569 = vcmp.gt.s32.totalorder 0, %v2568
    %v2570 = vsel %vm2569, 0, %v2568
    %v2571 = vsub.s32 32, %v2570
    %v2572 = vshll.u32 %v2563, %v2570
    %v2573 = vshrl.u32 %v2555, %v2571
    %v2574 = vor.u32 %v2572, %v2573
    %v2575 = vsub.s32 4294967266, %v2570
    %v2576 = vadd.s32 %v2575, 127
    %v2577 = vshll.u32 %v2576, 23
    %v2578 = vor.u32 4788187, %v2577
    %v2579 = vand.u32 2147483647, %v2578
    %v2581 = vcvt.s32.f32 %v2574
    %v2582 = vmul.f32 %v2581, %v2579
    %v2583 = vxor.u32 %v2582, 2147483648
    %v2584 = vsel %vm2463, %v2583, %v2582
    %v2585 = vsub.s32 4, %v2561
    %v2586 = vsel %vm2463, %v2585, %v2561
    %v2587 = vsel %vm2462, %v149, %v2584
    %v2588 = vsel %vm2462, 0, %v2586
    %v2589 = vmul.f32 %v2587, %v2587
    %v2590 = vmul.f32 %v2589, -0.001358992
    %v2591 = vadd.f32 %v2590, 0.041655596
    %v2592 = vmul.f32 %v2589, %v2591
    %v2593 = vadd.f32 %v2592, -0.4999988
    %v2594 = vmul.f32 %v2589, %v2593
    %v2595 = vadd.f32 1.0, %v2594
    %v2596 = vmul.f32 %v2587, %v2587
    %v2597 = vmul.f32 %v2596, -0.00019511016
    %v2598 = vadd.f32 %v2597, 0.008332121
    %v2599 = vmul.f32 %v2596, %v2598
    %v2600 = vadd.f32 %v2599, -0.16666654
    %v2601 = vmul.f32 %v2596, %v2600
    %v2602 = vadd.f32 %v2601, 1.0
    %v2603 = vmul.f32 %v2602, %v2587
    %vm2604 = vweird.f32 %v149
    %v2605 = vand.u32 %v2588, 3
    %vm2606 = vcmp.lt.s32.totalorder %v2605, 2
    %vm2607 = vcmp.eq.s32.totalorder %v2605, 0
    %v2608 = vxor.u32 %v2603, 2147483648
    %v2609 = vsel %vm2607, %v2595, %v2608
    %vm2610 = vcmp.eq.s32.totalorder %v2605, 2
    %v2611 = vxor.u32 %v2595, 2147483648
    %v2612 = vsel %vm2610, %v2611, %v2603
    %v2613 = vsel %vm2606, %v2609, %v2612
    %v2614 = vsel %vm2604, nan, %v2613
    %v2615 = vld [vmem:[%s2] sm:$0x1]
    %v2616 = vsel %vm82, %v2615, 0.0
    %2617 = vadd.xlane.f32.xlu0 %v2616
    %v2618 = vpop.xlane.xlu0 %2617
    %v2619 = vrot.slane %v2618, 4
    %v2620 = vadd.f32 %v2618, %v2619
    %v2621 = vrot.slane %v2620, 2
    %v2622 = vadd.f32 %v2620, %v2621
    %v2623 = vrot.slane %v2622, 1
    %v2624 = vadd.f32 %v2622, %v2623
    %s2625 = vtos %v2624
    %v2626 = vrcp.pop 128.0
    %v2627 = vmul.f32 128.0, %v2626
    %v2628 = vsub.f32 1.0, %v2627
    %v2629 = vmul.f32 %v2626, %v2628
    %v2630 = vadd.f32 %v2626, %v2629
    %vm2631 = vweird.f32 %v2626
    %v2632 = vsel %vm2631, %v2626, %v2630
    %s2633 = vtos %v2632
    %s2634 = smul.f32 %s2625, %s2633
    %v2635 = vstv %s2634
    %v2636 = vsub.f32 %v2615, %v2635
    %2637 = vmatpush.msra.mxu0 %v2614
    %2638 = vmatpush.msra.mxu0 %v2460
    %2639 = vmatpush.msra.mxu0 %v2306
    %2640 = vmatpush.msra.mxu0 %v2152
    %2641 = vmatpush.msra.mxu0 %v1998
    %2642 = vmatpush.msra.mxu0 %v1844
    %2643 = vmatpush.msra.mxu0 %v1690
    %2644 = vmatpush.msra.mxu0 %v1536
    %2645 = vmatpush.msra.mxu0 %v1382
    %2646 = vmatpush.msra.mxu0 %v1228
    %2647 = vmatpush.msra.mxu0 %v1074
    %2648 = vmatpush.msra.mxu0 %v920
    %2649 = vmatpush.msra.mxu0 %v766
    %2650 = vmatpush.msra.mxu0 %v612
    %2651 = vmatpush.msra.mxu0 %v458
    %2652 = vmatpush.msra.mxu0 %v304
    %2653 = vmatmul.f32.gmra.mxu0 %v2636
    %v2654 = vpop.f32.mrf.mxu0
    %v2655 = vadd.f32 0.0, %v2654
    %2656 = vdwg.mxu0
    %v2657 = vmul.f32 %v2655, %v2655
    %v2658 = vsel %vm82, %v2657, 0.0
    %2659 = vadd.xlane.f32.xlu0 %v2658
    %v2660 = vpop.xlane.xlu0 %2659
    %v2661 = vrot.slane %v2660, 4
    %v2662 = vadd.f32 %v2660, %v2661
    %v2663 = vrot.slane %v2662, 2
    %v2664 = vadd.f32 %v2662, %v2663
    %v2665 = vrot.slane %v2664, 1
    %v2666 = vadd.f32 %v2664, %v2665
    %s2667 = vtos %v2666
    %s2668 = smul.f32 %s2667, 9.536743e-07
    %v2669 = vmul.f32 %v2636, %v2636
    %v2670 = vsel %vm82, %v2669, 0.0
    %2671 = vadd.xlane.f32.xlu0 %v2670
    %v2672 = vpop.xlane.xlu0 %2671
    %v2673 = vrot.slane %v2672, 4
    %v2674 = vadd.f32 %v2672, %v2673
    %v2675 = vrot.slane %v2674, 2
    %v2676 = vadd.f32 %v2674, %v2675
    %v2677 = vrot.slane %v2676, 1
    %v2678 = vadd.f32 %v2676, %v2677
    %s2679 = vtos %v2678
    %v2680 = vrcp.pop 127.0
    %v2681 = vmul.f32 127.0, %v2680
    %v2682 = vsub.f32 1.0, %v2681
    %v2683 = vmul.f32 %v2680, %v2682
    %v2684 = vadd.f32 %v2680, %v2683
    %vm2685 = vweird.f32 %v2680
    %v2686 = vsel %vm2685, %v2680, %v2684
    %s2687 = vtos %v2686
    %s2688 = smul.f32 %s2679, %s2687
    %s2689 = sadd.f32 %s2688, 1e-06
    %v2690 = vstv %s2689
    %v2691 = vrcp.pop %v2690
    %v2692 = vmul.f32 %v2690, %v2691
    %v2693 = vsub.f32 1.0, %v2692
    %v2694 = vmul.f32 %v2691, %v2693
    %v2695 = vadd.f32 %v2691, %v2694
    %vm2696 = vweird.f32 %v2690
    %vm2697 = vweird.f32 %v2691
    %vm2698 = vmor %vm2696, %vm2697
    %v2699 = vsel %vm2698, %v2691, %v2695
    %v2700 = vand.u32 2147483647, %v2690
    %vm2701 = vcmp.eq.f32.partialorder %v2700, 8.507059e+37
    %v2702 = vand.u32 %v2690, 2147483648
    %v2703 = vor.u32 1.1754944e-38, %v2702
    %v2704 = vsel %vm2701, %v2703, %v2699
    %s2705 = vtos %v2704
    %s2706 = smul.f32 %s2668, %s2705
    %s2707 = sand.u32 2147483647, %s2706
    %s2708 = ssub.f32 0.0, %s2707
    %s2709 = scalar_lea.smem [#allocation2], 0
    %2710 = sst [smem:[%s2709]] %s2708
    // Predicated region
    $region14: #{tpu_custom_call.1} parent=1 // pred_check
      _
    $region15: #{tpu_custom_call.1} parent=1 // pred_check_branch
      %2712 = sbr.rel (0) target = $region17
    $region16: #{tpu_custom_call.1} parent=1 // pred_region
      %2714 = vsyncadd [#allocation3], 0
      %s2716 = sshll.u32 %s3, 4
      %s2717 = int_to_ptr.hbm [resolvable:$true] %s2716
      %2719 = dma.smem_to_hbm [#allocation2], 16, %s2717, [#allocation3]
    $region17: #{tpu_custom_call.1} parent=1 // pred_fallthru
      _
    // Predicated region
    $region18: #{tpu_custom_call.1} parent=1 // pred_check
      _
    $region19: #{tpu_custom_call.1} parent=1 // pred_check_branch
      %2721 = sbr.rel (0) target = $region21
    $region20: #{tpu_custom_call.1} parent=1 // pred_region
      %2723 = dma.done [#allocation3], 16
    $region21: #{tpu_custom_call.1} parent=1 // pred_fallthru
      _
    %2724 = sfence
    %2725 = vsyncpa [#allocation3], 1

</llo_original>
